<compile_context>
chip_gen: v6e
topology: v6e:2x2x1
jax: 0.10.0
libtpu: 0.0.40
codegen_flags: <defaults>
</compile_context>

<pallas_src>
import functools

import jax
import jax.numpy as jnp
from jax.experimental import pallas as pl
from jax.experimental.pallas import tpu as pltpu


# ----------------------------------------------------------------------------
# Hardware / tiling helpers
# ----------------------------------------------------------------------------
def _vmem_capacity_bytes():
    try:
        info = pltpu.get_tpu_info()
        cap = getattr(info, "vmem_capacity_bytes", None)
        if cap:
            return int(cap)
    except Exception:
        pass
    return 64 * 1024 * 1024  # conservative fallback (v7x per-core VMEM)


def _c_tile_candidates(C):
    """Sublane-aligned C tiles (multiples of 8 dividing C), largest first.
    C itself is always legal (full-extent block needs no alignment)."""
    if C % 8 != 0:
        return [C]
    return [c for c in range(C, 0, -8) if C % c == 0]


def _pick_s_tile(S_pad, max_lanes):
    """Largest multiple-of-128 divisor of S_pad that is <= max_lanes (floor 128)."""
    best = 128
    m = 1
    limit = min(S_pad, max(int(max_lanes), 128))
    while 128 * m <= limit:
        t = 128 * m
        if S_pad % t == 0:
            best = t
        m += 1
    return best


def _choose_tiles(N, C, S_pad, bytes_per_elem, budget,
                  min_c_steps=1, min_total_steps=1):
    """Pick (c_tile, s_tile): keep s_tile >= min(512, S_pad) lanes and shrink the
    C tile (multiples of 8) instead, so DMA runs stay long at large N*C."""
    cands = _c_tile_candidates(C)
    if min_c_steps > 1:
        sub = [c for c in cands if C // c >= min_c_steps]
        if sub:
            cands = sub
    min_lanes = min(512, S_pad)
    ct, st = cands[-1], 128
    chosen = False
    for c in cands:                      # largest C tile first
        max_lanes = budget // (bytes_per_elem * N * c)
        if max_lanes >= min_lanes:
            ct, st = c, _pick_s_tile(S_pad, max_lanes)
            chosen = True
            break
    if not chosen:
        ct = cands[-1]
        max_lanes = max(budget // (bytes_per_elem * N * ct), 128)
        st = _pick_s_tile(S_pad, max_lanes)
    # Ensure enough grid steps to shard across TensorCores (v7x megacore).
    if (C // ct) * (S_pad // st) < min_total_steps:
        smaller = _pick_s_tile(S_pad, max(st // 2, 128))
        if smaller < st:
            st = smaller
        else:
            idx = cands.index(ct)
            if idx + 1 < len(cands):
                ct = cands[idx + 1]
    return ct, st


# ----------------------------------------------------------------------------
# Pass 1 (two-pass path): pooled branch-sum, pure streaming reduction.
# Grid = (C tiles [parallel], S tiles [arbitrary]); output (N, C, 1) is
# accumulated directly in the resident output block.
# ----------------------------------------------------------------------------
def _pool_sum_kernel(x0_ref, x1_ref, o_ref):
    @pl.when(pl.program_id(1) == 0)
    def _():
        o_ref[...] = jnp.zeros_like(o_ref)

    # Branch-sum once per tile, single cross-lane reduce; fea_U never hits HBM.
    o_ref[...] += jnp.sum(x0_ref[...] + x1_ref[...], axis=-1, keepdims=True)


# ----------------------------------------------------------------------------
# Tiny attention chain (fc -> BN(train) -> ReLU -> per-branch fc -> softmax),
# run as plain JAX between the two pallas_calls so pass 1 stays a pure,
# megacore-shardable reduction.
# ----------------------------------------------------------------------------
def _attention_chain(fea_s, w1, b1, bn_w, bn_b, w2, b2, gamma, eps):
    hi = jax.lax.Precision.HIGHEST
    fea_z = jnp.dot(fea_s, w1.T, precision=hi) + b1
    # BatchNorm1d, training mode: batch statistics over N, biased variance.
    mu = jnp.mean(fea_z, axis=0, keepdims=True)
    var = jnp.mean((fea_z - mu) ** 2, axis=0, keepdims=True)
    fea_z = (fea_z - mu) * jax.lax.rsqrt(var + eps) * bn_w + bn_b
    fea_z = jnp.maximum(fea_z, 0.0)
    v0 = jnp.dot(fea_z, w2[0].T, precision=hi) + b2[0]
    v1 = jnp.dot(fea_z, w2[1].T, precision=hi) + b2[1]
    # 2-branch softmax over gamma-scaled logits == sigmoid of the difference.
    a0 = jax.nn.sigmoid((v0 - v1) * gamma)
    return a0, 1.0 - a0


# ----------------------------------------------------------------------------
# Pass 2 (two-pass path): lane-dense rescale + channel concat.
# Output (N, 2, C, S) is bit-identical to torch's split/cat after a free
# reshape (branch-0 channels then branch-1 channels).
# ----------------------------------------------------------------------------
def _rescale_kernel(x0_ref, x1_ref, a0_ref, a1_ref, o_ref):
    o_ref[:, 0] = x0_ref[...] * a0_ref[...]
    o_ref[:, 1] = x1_ref[...] * a1_ref[...]


# ----------------------------------------------------------------------------
# Single-pass (VMEM-resident) variant: x0/x1 stay in VMEM, pool + chain +
# rescale in one kernel -> only one HBM read of x (4 traffic units vs 6).
# ----------------------------------------------------------------------------
def _fused_kernel(x0_ref, x1_ref, w1t_ref, b1_ref, bnw_ref, bnb_ref,
                  w2t_ref, b2_ref, o_ref, *, gamma, eps, inv_s):
    hi = jax.lax.Precision.HIGHEST  # scoped to the tiny dots only
    fea_s = (jnp.sum(x0_ref[...], axis=-1) +
             jnp.sum(x1_ref[...], axis=-1)) * inv_s                    # (N, C)

    fea_z = jnp.dot(fea_s, w1t_ref[...], precision=hi,
                    preferred_element_type=jnp.float32) + b1_ref[...]
    mu = jnp.mean(fea_z, axis=0, keepdims=True)
    var = jnp.mean((fea_z - mu) ** 2, axis=0, keepdims=True)
    fea_z = (fea_z - mu) * jax.lax.rsqrt(var + eps)
    fea_z = jnp.maximum(fea_z * bnw_ref[...] + bnb_ref[...], 0.0)

    v0 = jnp.dot(fea_z, w2t_ref[0], precision=hi,
                 preferred_element_type=jnp.float32) + b2_ref[0]
    v1 = jnp.dot(fea_z, w2t_ref[1], precision=hi,
                 preferred_element_type=jnp.float32) + b2_ref[1]
    a0 = 1.0 / (1.0 + jnp.exp(-(v0 - v1) * gamma))
    a1 = 1.0 - a0

    o_ref[:, 0] = x0_ref[...] * a0[:, :, None]
    o_ref[:, 1] = x1_ref[...] * a1[:, :, None]


# ----------------------------------------------------------------------------
# Wrapper
# ----------------------------------------------------------------------------
def cstp_stage2_adaptive_fusion(x_list, w1, b1, bn_w, bn_b, w2, b2,
                                gamma=1.0, eps=1e-5, single_pass=None):
    assert len(x_list) == 2, "torch forward's split into top_down/bottom_up assumes 2 branches"
    N, C, T, H, W = x_list[0].shape
    S = T * H * W

    # Free, contiguous reshapes -- no branch stacking (no extra HBM pass).
    x0 = x_list[0].reshape(N, C, S)
    x1 = x_list[1].reshape(N, C, S)

    vmem_cap = _vmem_capacity_bytes()
    vmem_limit = int(min((vmem_cap * 3) // 4, 96 * 1024 * 1024))
    tile_budget = int(min(vmem_cap // 4, 32 * 1024 * 1024))

    # Gate the single-pass variant on the fully VMEM-resident working set
    # (x0 + x1 + 2x-sized output, plus 25% + 2 MiB slack for temporaries).
    fused_need = 4 * N * C * S * 4
    use_fused = (fused_need + fused_need // 4 + (2 << 20)) <= (vmem_limit * 7) // 10
    if single_pass is not None:
        use_fused = bool(single_pass)

    if use_fused:
        d = w1.shape[0]
        w1t = jnp.transpose(w1)                  # (C, d)
        w2t = jnp.transpose(w2, (0, 2, 1))       # (2, d, C)
        b1r = b1.reshape(1, d)
        bnw = bn_w.reshape(1, d)
        bnb = bn_b.reshape(1, d)
        b2r = b2.reshape(2, 1, C)
        kern = functools.partial(_fused_kernel, gamma=float(gamma),
                                 eps=float(eps), inv_s=1.0 / float(S))
        out = pl.pallas_call(
            kern,
            out_shape=jax.ShapeDtypeStruct((N, 2, C, S), jnp.float32),
            compiler_params=pltpu.CompilerParams(vmem_limit_bytes=vmem_limit),
        )(x0, x1, w1t, b1r, bnw, bnb, w2t, b2r)
        return out.reshape(N, 2 * C, T, H, W)

    # ------------------------- tiled two-pass path -------------------------
    S_pad = ((S + 127) // 128) * 128
    if S_pad != S:
        # TODO(synk): padding costs one extra HBM copy of x for ragged spatial
        # sizes; a full-extent-S + C-only-tiled fallback would avoid it.
        pad = ((0, 0), (0, 0), (0, S_pad - S))
        x0p = jnp.pad(x0, pad)
        x1p = jnp.pad(x1, pad)
    else:
        x0p, x1p = x0, x1

    # ---- pass 1: pooled branch-sum (pure reduction, C axis parallel) ----
    ct1, st1 = _choose_tiles(N, C, S_pad, bytes_per_elem=16,
                             budget=tile_budget, min_c_steps=2)
    pooled = pl.pallas_call(
        _pool_sum_kernel,
        out_shape=jax.ShapeDtypeStruct((N, C, 1), jnp.float32),
        grid=(C // ct1, S_pad // st1),
        in_specs=[
            pl.BlockSpec((N, ct1, st1), lambda c, s: (0, c, s)),
            pl.BlockSpec((N, ct1, st1), lambda c, s: (0, c, s)),
        ],
        out_specs=pl.BlockSpec((N, ct1, 1), lambda c, s: (0, c, 0)),
        compiler_params=pltpu.CompilerParams(
            dimension_semantics=("parallel", "arbitrary"),
            vmem_limit_bytes=vmem_limit),
    )(x0p, x1p)

    # ---- tiny attention chain in plain JAX ----
    fea_s = pooled[..., 0] * (1.0 / float(S))    # zero-padding doesn't affect the sum
    a0, a1 = _attention_chain(fea_s, w1, b1, bn_w, bn_b, w2, b2,
                              float(gamma), float(eps))
    a0r = a0.reshape(N, C, 1)
    a1r = a1.reshape(N, C, 1)

    # ---- pass 2: rescale + concat (C/S co-tiled, both axes parallel) ----
    ct2, st2 = _choose_tiles(N, C, S_pad, bytes_per_elem=32,
                             budget=tile_budget, min_total_steps=2)
    out = pl.pallas_call(
        _rescale_kernel,
        out_shape=jax.ShapeDtypeStruct((N, 2, C, S_pad), jnp.float32),
        grid=(C // ct2, S_pad // st2),
        in_specs=[
            pl.BlockSpec((N, ct2, st2), lambda c, s: (0, c, s)),
            pl.BlockSpec((N, ct2, st2), lambda c, s: (0, c, s)),
            pl.BlockSpec((N, ct2, 1), lambda c, s: (0, c, 0)),
            pl.BlockSpec((N, ct2, 1), lambda c, s: (0, c, 0)),
        ],
        out_specs=pl.BlockSpec((N, 2, ct2, st2), lambda c, s: (0, 0, c, s)),
        compiler_params=pltpu.CompilerParams(
            dimension_semantics=("parallel", "parallel"),
            vmem_limit_bytes=vmem_limit),
    )(x0p, x1p, a0r, a1r)

    if S_pad != S:
        out = out[..., :S]
    return out.reshape(N, 2 * C, T, H, W)


# ----------------------------------------------------------------------------
# Pure-JAX reference (mirrors the PyTorch forward, training-mode BN).
# ----------------------------------------------------------------------------
def _reference(x_list, w1, b1, bn_w, bn_b, w2, b2, gamma=1.0, eps=1e-5):
    hi = jax.lax.Precision.HIGHEST
    flow = jnp.stack(x_list, axis=1)                        # (N, B, C, T, H, W)
    fea_u = jnp.sum(flow, axis=1)                           # (N, C, T, H, W)
    fea_s = jnp.mean(fea_u, axis=(2, 3, 4))                 # (N, C)
    fea_z = jnp.dot(fea_s, w1.T, precision=hi) + b1         # (N, d)
    mu = jnp.mean(fea_z, axis=0)
    var = jnp.mean((fea_z - mu) ** 2, axis=0)
    fea_z = (fea_z - mu) * jax.lax.rsqrt(var + eps) * bn_w + bn_b
    fea_z = jnp.maximum(fea_z, 0.0)
    vecs = jnp.stack([jnp.dot(fea_z, w2[i].T, precision=hi) + b2[i]
                      for i in range(w2.shape[0])], axis=1)  # (N, B, C)
    att = jax.nn.softmax(vecs * gamma, axis=1)
    fea_v = flow * att[:, :, :, None, None, None]
    return jnp.concatenate([fea_v[:, 0], fea_v[:, 1]], axis=1)  # (N, 2C, T, H, W)


if __name__ == "__main__":
    def run_case(key, N, C, T, H, W, rate=2, L_min=32, gamma=1.0, **kw):
        d = max(C // rate, L_min)
        k = jax.random.split(key, 8)
        x_list = [jax.random.normal(k[0], (N, C, T, H, W), jnp.float32),
                  jax.random.normal(k[1], (N, C, T, H, W), jnp.float32)]
        w1 = 0.1 * jax.random.normal(k[2], (d, C), jnp.float32)          # fc.weight
        b1 = 0.1 * jax.random.normal(k[3], (d,), jnp.float32)            # fc.bias
        bn_w = 1.0 + 0.1 * jax.random.normal(k[4], (d,), jnp.float32)    # bn.weight
        bn_b = 0.1 * jax.random.normal(k[5], (d,), jnp.float32)          # bn.bias
        w2 = 0.1 * jax.random.normal(k[6], (2, C, d), jnp.float32)       # fcs[i].weight
        b2 = 0.1 * jax.random.normal(k[7], (2, C), jnp.float32)          # fcs[i].bias

        out = cstp_stage2_adaptive_fusion(x_list, w1, b1, bn_w, bn_b, w2, b2,
                                          gamma=gamma, **kw)
        out = jax.block_until_ready(out)
        ref = _reference(x_list, w1, b1, bn_w, bn_b, w2, b2, gamma=gamma)
        assert out.shape == (N, 2 * C, T, H, W)
        assert jnp.allclose(out, ref, rtol=1e-4, atol=1e-4), "mismatch vs reference"

    key = jax.random.PRNGKey(0)
    k1, k2 = jax.random.split(key)
    # 1) small shape -> size-gated single-pass (VMEM-resident) path
    run_case(k1, N=2, C=16, T=8, H=16, W=16)
    # 2) same shape forced through the tiled two-pass path (C/S co-tiled grid,
    #    pass-1 parallel C axis, pass-2 grid >= 2 steps)
    run_case(k1, N=2, C=16, T=8, H=16, W=16, single_pass=False)
    # 3) ragged spatial size (S=105 -> padded to 128) and non-multiple-of-8 C
    run_case(k2, N=2, C=12, T=3, H=5, W=7, single_pass=False)
    print("KERNEL_OK")
</pallas_src>

<mosaic_0001>
module attributes {stable_mosaic.version = 11 : i64} {
  func.func @_fused_kernel(%arg0: memref<2x16x2048xf32, #tpu.memory_space<vmem>>, %arg1: memref<2x16x2048xf32, #tpu.memory_space<vmem>>, %arg2: memref<16x32xf32, #tpu.memory_space<vmem>>, %arg3: memref<1x32xf32, #tpu.memory_space<vmem>>, %arg4: memref<1x32xf32, #tpu.memory_space<vmem>>, %arg5: memref<1x32xf32, #tpu.memory_space<vmem>>, %arg6: memref<2x32x16xf32, #tpu.memory_space<vmem>>, %arg7: memref<2x1x16xf32, #tpu.memory_space<vmem>>, %arg8: memref<2x2x16x2048xf32, #tpu.memory_space<vmem>>) attributes {dimension_semantics = [], scalar_prefetch = 0 : i64, scratch_operands = 0 : i64, tpu.core_type = #tpu.core_type<tc>} {
    %c0 = arith.constant 0 : index
    %c0_0 = arith.constant 0 : index
    %c0_1 = arith.constant 0 : index
    %0 = vector.load %arg0[%c0, %c0_0, %c0_1] : memref<2x16x2048xf32, #tpu.memory_space<vmem>>, vector<2x16x2048xf32>
    %cst = arith.constant dense<0.000000e+00> : vector<2x16xf32>
    %1 = vector.multi_reduction <add>, %0, %cst [2] : vector<2x16x2048xf32> to vector<2x16xf32>
    %c0_2 = arith.constant 0 : index
    %c0_3 = arith.constant 0 : index
    %c0_4 = arith.constant 0 : index
    %2 = vector.load %arg1[%c0_2, %c0_3, %c0_4] : memref<2x16x2048xf32, #tpu.memory_space<vmem>>, vector<2x16x2048xf32>
    %cst_5 = arith.constant dense<0.000000e+00> : vector<2x16xf32>
    %3 = vector.multi_reduction <add>, %2, %cst_5 [2] : vector<2x16x2048xf32> to vector<2x16xf32>
    %4 = arith.addf %1, %3 : vector<2x16xf32>
    %cst_6 = arith.constant 4.8828125E-4 : f32
    %5 = vector.broadcast %cst_6 : f32 to vector<2x16xf32>
    %6 = arith.mulf %4, %5 : vector<2x16xf32>
    %c0_7 = arith.constant 0 : index
    %c0_8 = arith.constant 0 : index
    %7 = vector.load %arg2[%c0_7, %c0_8] : memref<16x32xf32, #tpu.memory_space<vmem>>, vector<16x32xf32>
    %cst_9 = arith.constant dense<0.000000e+00> : vector<2x32xf32>
    %8 = tpu.matmul %6, %7, %cst_9 {dimension_numbers = #tpu.dot_dimension_numbers<[1], [0], [0], [1], [0, 0, 1, 1], [], []>, precision = #tpu.contract_precision<fp32>} : vector<2x16xf32>, vector<16x32xf32>, vector<2x32xf32> -> vector<2x32xf32>
    %c0_10 = arith.constant 0 : index
    %c0_11 = arith.constant 0 : index
    %9 = vector.load %arg3[%c0_10, %c0_11] : memref<1x32xf32, #tpu.memory_space<vmem>>, vector<1x32xf32>
    %10 = vector.broadcast %9 : vector<1x32xf32> to vector<2x32xf32>
    %11 = arith.addf %8, %10 : vector<2x32xf32>
    %cst_12 = arith.constant dense<0.000000e+00> : vector<32xf32>
    %12 = vector.multi_reduction <add>, %11, %cst_12 [0] : vector<2x32xf32> to vector<32xf32>
    %13 = vector.shape_cast %12 : vector<32xf32> to vector<1x32xf32>
    %cst_13 = arith.constant 2.000000e+00 : f32
    %14 = vector.broadcast %cst_13 : f32 to vector<1x32xf32>
    %15 = arith.divf %13, %14 : vector<1x32xf32>
    %16 = vector.broadcast %15 : vector<1x32xf32> to vector<2x32xf32>
    %17 = arith.subf %11, %16 : vector<2x32xf32>
    %18 = arith.mulf %17, %17 : vector<2x32xf32>
    %cst_14 = arith.constant dense<0.000000e+00> : vector<32xf32>
    %19 = vector.multi_reduction <add>, %18, %cst_14 [0] : vector<2x32xf32> to vector<32xf32>
    %20 = vector.shape_cast %19 : vector<32xf32> to vector<1x32xf32>
    %cst_15 = arith.constant 2.000000e+00 : f32
    %21 = vector.broadcast %cst_15 : f32 to vector<1x32xf32>
    %22 = arith.divf %20, %21 : vector<1x32xf32>
    %23 = vector.broadcast %15 : vector<1x32xf32> to vector<2x32xf32>
    %24 = arith.subf %11, %23 : vector<2x32xf32>
    %cst_16 = arith.constant 9.99999974E-6 : f32
    %25 = vector.broadcast %cst_16 : f32 to vector<1x32xf32>
    %26 = arith.addf %22, %25 : vector<1x32xf32>
    %27 = math.rsqrt %26 : vector<1x32xf32>
    %28 = vector.broadcast %27 : vector<1x32xf32> to vector<2x32xf32>
    %29 = arith.mulf %24, %28 : vector<2x32xf32>
    %c0_17 = arith.constant 0 : index
    %c0_18 = arith.constant 0 : index
    %30 = vector.load %arg4[%c0_17, %c0_18] : memref<1x32xf32, #tpu.memory_space<vmem>>, vector<1x32xf32>
    %31 = vector.broadcast %30 : vector<1x32xf32> to vector<2x32xf32>
    %32 = arith.mulf %29, %31 : vector<2x32xf32>
    %c0_19 = arith.constant 0 : index
    %c0_20 = arith.constant 0 : index
    %33 = vector.load %arg5[%c0_19, %c0_20] : memref<1x32xf32, #tpu.memory_space<vmem>>, vector<1x32xf32>
    %34 = vector.broadcast %33 : vector<1x32xf32> to vector<2x32xf32>
    %35 = arith.addf %32, %34 : vector<2x32xf32>
    %cst_21 = arith.constant 0.000000e+00 : f32
    %36 = vector.broadcast %cst_21 : f32 to vector<2x32xf32>
    %37 = arith.maximumf %35, %36 : vector<2x32xf32>
    %c0_22 = arith.constant 0 : index
    %c0_23 = arith.constant 0 : index
    %c0_24 = arith.constant 0 : index
    %38 = vector.load %arg6[%c0_22, %c0_23, %c0_24] : memref<2x32x16xf32, #tpu.memory_space<vmem>>, vector<1x32x16xf32>
    %39 = vector.shape_cast %38 : vector<1x32x16xf32> to vector<32x16xf32>
    %cst_25 = arith.constant dense<0.000000e+00> : vector<2x16xf32>
    %40 = tpu.matmul %37, %39, %cst_25 {dimension_numbers = #tpu.dot_dimension_numbers<[1], [0], [0], [1], [0, 0, 1, 1], [], []>, precision = #tpu.contract_precision<fp32>} : vector<2x32xf32>, vector<32x16xf32>, vector<2x16xf32> -> vector<2x16xf32>
    %c0_26 = arith.constant 0 : index
    %c0_27 = arith.constant 0 : index
    %c0_28 = arith.constant 0 : index
    %41 = vector.load %arg7[%c0_26, %c0_27, %c0_28] : memref<2x1x16xf32, #tpu.memory_space<vmem>>, vector<1x1x16xf32>
    %42 = vector.shape_cast %41 : vector<1x1x16xf32> to vector<1x16xf32>
    %43 = vector.broadcast %42 : vector<1x16xf32> to vector<2x16xf32>
    %44 = arith.addf %40, %43 : vector<2x16xf32>
    %c1 = arith.constant 1 : index
    %c0_29 = arith.constant 0 : index
    %c0_30 = arith.constant 0 : index
    %45 = vector.load %arg6[%c1, %c0_29, %c0_30] : memref<2x32x16xf32, #tpu.memory_space<vmem>>, vector<1x32x16xf32>
    %46 = vector.shape_cast %45 : vector<1x32x16xf32> to vector<32x16xf32>
    %cst_31 = arith.constant dense<0.000000e+00> : vector<2x16xf32>
    %47 = tpu.matmul %37, %46, %cst_31 {dimension_numbers = #tpu.dot_dimension_numbers<[1], [0], [0], [1], [0, 0, 1, 1], [], []>, precision = #tpu.contract_precision<fp32>} : vector<2x32xf32>, vector<32x16xf32>, vector<2x16xf32> -> vector<2x16xf32>
    %c1_32 = arith.constant 1 : index
    %c0_33 = arith.constant 0 : index
    %c0_34 = arith.constant 0 : index
    %48 = vector.load %arg7[%c1_32, %c0_33, %c0_34] : memref<2x1x16xf32, #tpu.memory_space<vmem>>, vector<1x1x16xf32>
    %49 = vector.shape_cast %48 : vector<1x1x16xf32> to vector<1x16xf32>
    %50 = vector.broadcast %49 : vector<1x16xf32> to vector<2x16xf32>
    %51 = arith.addf %47, %50 : vector<2x16xf32>
    %52 = arith.subf %44, %51 : vector<2x16xf32>
    %cst_35 = arith.constant 0.000000e+00 : f32
    %53 = vector.broadcast %cst_35 : f32 to vector<2x16xf32>
    %54 = arith.subf %53, %52 : vector<2x16xf32>
    %cst_36 = arith.constant 1.000000e+00 : f32
    %55 = vector.broadcast %cst_36 : f32 to vector<2x16xf32>
    %56 = arith.mulf %54, %55 : vector<2x16xf32>
    %57 = math.exp %56 : vector<2x16xf32>
    %cst_37 = arith.constant 1.000000e+00 : f32
    %58 = vector.broadcast %cst_37 : f32 to vector<2x16xf32>
    %59 = arith.addf %58, %57 : vector<2x16xf32>
    %cst_38 = arith.constant 1.000000e+00 : f32
    %60 = vector.broadcast %cst_38 : f32 to vector<2x16xf32>
    %61 = arith.divf %60, %59 : vector<2x16xf32>
    %cst_39 = arith.constant 1.000000e+00 : f32
    %62 = vector.broadcast %cst_39 : f32 to vector<2x16xf32>
    %63 = arith.subf %62, %61 : vector<2x16xf32>
    %c0_40 = arith.constant 0 : index
    %c0_41 = arith.constant 0 : index
    %c0_42 = arith.constant 0 : index
    %64 = vector.load %arg0[%c0_40, %c0_41, %c0_42] : memref<2x16x2048xf32, #tpu.memory_space<vmem>>, vector<2x16x2048xf32>
    %65 = vector.shape_cast %61 : vector<2x16xf32> to vector<2x16x1xf32>
    %66 = vector.broadcast %65 : vector<2x16x1xf32> to vector<2x16x2048xf32>
    %67 = arith.mulf %64, %66 : vector<2x16x2048xf32>
    %c0_43 = arith.constant 0 : index
    %c0_44 = arith.constant 0 : index
    %c0_45 = arith.constant 0 : index
    %c0_46 = arith.constant 0 : index
    %68 = vector.load %arg8[%c0_43, %c0_44, %c0_45, %c0_46] : memref<2x2x16x2048xf32, #tpu.memory_space<vmem>>, vector<2x1x16x2048xf32>
    %69 = vector.shape_cast %68 : vector<2x1x16x2048xf32> to vector<2x16x2048xf32>
    %70 = vector.shape_cast %67 : vector<2x16x2048xf32> to vector<2x1x16x2048xf32>
    tpu.vector_store %arg8[%c0_43, %c0_44, %c0_45, %c0_46], %70 {strides = array<i32>} : memref<2x2x16x2048xf32, #tpu.memory_space<vmem>>, vector<2x1x16x2048xf32>,
    %c0_47 = arith.constant 0 : index
    %c0_48 = arith.constant 0 : index
    %c0_49 = arith.constant 0 : index
    %71 = vector.load %arg1[%c0_47, %c0_48, %c0_49] : memref<2x16x2048xf32, #tpu.memory_space<vmem>>, vector<2x16x2048xf32>
    %72 = vector.shape_cast %63 : vector<2x16xf32> to vector<2x16x1xf32>
    %73 = vector.broadcast %72 : vector<2x16x1xf32> to vector<2x16x2048xf32>
    %74 = arith.mulf %71, %73 : vector<2x16x2048xf32>
    %c0_50 = arith.constant 0 : index
    %c1_51 = arith.constant 1 : index
    %c0_52 = arith.constant 0 : index
    %c0_53 = arith.constant 0 : index
    %75 = vector.load %arg8[%c0_50, %c1_51, %c0_52, %c0_53] : memref<2x2x16x2048xf32, #tpu.memory_space<vmem>>, vector<2x1x16x2048xf32>
    %76 = vector.shape_cast %75 : vector<2x1x16x2048xf32> to vector<2x16x2048xf32>
    %77 = vector.shape_cast %74 : vector<2x16x2048xf32> to vector<2x1x16x2048xf32>
    tpu.vector_store %arg8[%c0_50, %c1_51, %c0_52, %c0_53], %77 {strides = array<i32>} : memref<2x2x16x2048xf32, #tpu.memory_space<vmem>>, vector<2x1x16x2048xf32>,
    return
  }
}

</mosaic_0001>

<llo_original>
// kernel: tpu_custom_call.1
$region0: #{tpu_custom_call.1}
  #allocation0 [shape = 'u32[]', space=smem, size = 0x4, offset = 0x4, fixed_abs, tag = 'smem constant byte address 0x4 - core index']
  #allocation1 [shape = 'u32[144,128]{1,0:T(1,128)}', space=vmem, size = 0x12000, scoped, tag = 'internal scratch']
  %s0 = inlined_call_operand.hbm [shape: f32[2,16,2048], index: 0, kind: input, shape index: {}]
  %s1 = inlined_call_operand.hbm [shape: f32[2,16,2048], index: 1, kind: input, shape index: {}]
  %s2 = inlined_call_operand.vmem [shape: f32[16,32], index: 2, kind: input, shape index: {}]
  %s3 = inlined_call_operand.vmem [shape: f32[1,32], index: 3, kind: input, shape index: {}]
  %s4 = inlined_call_operand.vmem [shape: f32[1,32], index: 4, kind: input, shape index: {}]
  %s5 = inlined_call_operand.vmem [shape: f32[1,32], index: 5, kind: input, shape index: {}]
  %s6 = inlined_call_operand.vmem [shape: f32[2,32,16], index: 6, kind: input, shape index: {}]
  %s7 = inlined_call_operand.vmem [shape: f32[2,1,16], index: 7, kind: input, shape index: {}]
  %s8 = inlined_call_operand.hbm [shape: f32[2,2,16,2048], index: 8, kind: output, shape index: {}]
  %s9 = sld [smem:[#allocation0]]
  $region50: #{tpu_custom_call.1} parent=0
    _
  %s11 = ssub.s32 1, %s9
  %s12 = scalar_select 0, %s11, %s9
  $region1: #{tpu_custom_call.1} parent=0
    #allocation2 [shape = 'u8[262144]{0}', space=vmem, size = 0x40000, scoped, tag = 'input window, operand 0, single buffered']
    #allocation3 [shape = 's32[1]{0}', space=sflag, size = 0x4, scoped, tag = 'scoped memory for tpu_custom_call.1']
    #allocation4 [shape = 's32[1]{0}', space=sflag, size = 0x4, scoped, tag = 'scoped memory for tpu_custom_call.1']
    #allocation5 [shape = 'u8[262144]{0}', space=vmem, size = 0x40000, scoped, tag = 'input window, operand 1, single buffered']
    #allocation6 [shape = 's32[1]{0}', space=sflag, size = 0x4, scoped, tag = 'scoped memory for tpu_custom_call.1']
    #allocation7 [shape = 'u8[524288]{0}', space=vmem, size = 0x80000, scoped, tag = 'output window, operand 0, single buffered']
    %13 = vsyncpa [#allocation3], 0
    %14 = vsyncpa [#allocation6], 0
    %15 = vsyncpa [#allocation4], 0
    // Predicated region
    $region2: #{tpu_custom_call.1} parent=1 // pred_check
      _
    $region3: #{tpu_custom_call.1} parent=1 // pred_check_branch
      %17 = sbr.rel (0) target = $region5
    $region4: #{tpu_custom_call.1} parent=1 // pred_region
      %s19 = ssub.s32 8192, 8192
      %20 = vsyncadd [#allocation3], %s19
      %s21 = sshll.u32 [#allocation2], 4
      %s22 = int_to_ptr.vmem [resolvable:$true] %s21
      %27 = dma.hbm_to_vmem [thread:$0]  %s0, 8192, %s22, [#allocation3], 2048, 2048, 128
    $region5: #{tpu_custom_call.1} parent=1 // pred_fallthru
      _
    // Predicated region
    $region6: #{tpu_custom_call.1} parent=1 // pred_check
      _
    $region7: #{tpu_custom_call.1} parent=1 // pred_check_branch
      %29 = sbr.rel (0) target = $region9
    $region8: #{tpu_custom_call.1} parent=1 // pred_region
      %s31 = ssub.s32 8192, 8192
      %32 = vsyncadd [#allocation6], %s31
      %s33 = sshll.u32 [#allocation5], 4
      %s34 = int_to_ptr.vmem [resolvable:$true] %s33
      %39 = dma.hbm_to_vmem [thread:$0]  %s1, 8192, %s34, [#allocation6], 2048, 2048, 128
    $region9: #{tpu_custom_call.1} parent=1 // pred_fallthru
      _
    // Predicated region
    $region10: #{tpu_custom_call.1} parent=1 // pred_check
      _
    $region11: #{tpu_custom_call.1} parent=1 // pred_check_branch
      %41 = sbr.rel (0) target = $region13
    $region12: #{tpu_custom_call.1} parent=1 // pred_region
      _
    $region13: #{tpu_custom_call.1} parent=1 // pred_fallthru
      _
    // Predicated region
    $region14: #{tpu_custom_call.1} parent=1 // pred_check
      _
    $region15: #{tpu_custom_call.1} parent=1 // pred_check_branch
      %43 = sbr.rel (0) target = $region17
    $region16: #{tpu_custom_call.1} parent=1 // pred_region
      _
    $region17: #{tpu_custom_call.1} parent=1 // pred_fallthru
      _
    // Predicated region
    $region18: #{tpu_custom_call.1} parent=1 // pred_check
      _
    $region19: #{tpu_custom_call.1} parent=1 // pred_check_branch
      %45 = sbr.rel (0) target = $region21
    $region20: #{tpu_custom_call.1} parent=1 // pred_region
      _
    $region21: #{tpu_custom_call.1} parent=1 // pred_fallthru
      _
    // Predicated region
    $region22: #{tpu_custom_call.1} parent=1 // pred_check
      _
    $region23: #{tpu_custom_call.1} parent=1 // pred_check_branch
      %47 = sbr.rel (0) target = $region25
    $region24: #{tpu_custom_call.1} parent=1 // pred_region
      _
    $region25: #{tpu_custom_call.1} parent=1 // pred_fallthru
      _
    // Predicated region
    $region26: #{tpu_custom_call.1} parent=1 // pred_check
      _
    $region27: #{tpu_custom_call.1} parent=1 // pred_check_branch
      %49 = sbr.rel (0) target = $region29
    $region28: #{tpu_custom_call.1} parent=1 // pred_region
      _
    $region29: #{tpu_custom_call.1} parent=1 // pred_fallthru
      _
    // Predicated region
    $region30: #{tpu_custom_call.1} parent=1 // pred_check
      _
    $region31: #{tpu_custom_call.1} parent=1 // pred_check_branch
      %51 = sbr.rel (0) target = $region33
    $region32: #{tpu_custom_call.1} parent=1 // pred_region
      _
    $region33: #{tpu_custom_call.1} parent=1 // pred_fallthru
      _
    // Predicated region
    $region34: #{tpu_custom_call.1} parent=1 // pred_check
      _
    $region35: #{tpu_custom_call.1} parent=1 // pred_check_branch
      %53 = sbr.rel (0) target = $region37
    $region36: #{tpu_custom_call.1} parent=1 // pred_region
      %54 = dma.done [#allocation3], 8192
    $region37: #{tpu_custom_call.1} parent=1 // pred_fallthru
      _
    // Predicated region
    $region38: #{tpu_custom_call.1} parent=1 // pred_check
      _
    $region39: #{tpu_custom_call.1} parent=1 // pred_check_branch
      %56 = sbr.rel (0) target = $region41
    $region40: #{tpu_custom_call.1} parent=1 // pred_region
      %57 = dma.done [#allocation6], 8192
    $region41: #{tpu_custom_call.1} parent=1 // pred_fallthru
      _
    %v58 = vld [vmem:[#allocation2] sm:$0xff]
    %v59 = vld [vmem:[#allocation2 + $0x8] sm:$0xff]
    %v60 = vld [vmem:[#allocation2 + $0x10] sm:$0xff]
    %v61 = vld [vmem:[#allocation2 + $0x18] sm:$0xff]
    %v62 = vld [vmem:[#allocation2 + $0x20] sm:$0xff]
    %v63 = vld [vmem:[#allocation2 + $0x28] sm:$0xff]
    %v64 = vld [vmem:[#allocation2 + $0x30] sm:$0xff]
    %v65 = vld [vmem:[#allocation2 + $0x38] sm:$0xff]
    %v66 = vld [vmem:[#allocation2 + $0x40] sm:$0xff]
    %v67 = vld [vmem:[#allocation2 + $0x48] sm:$0xff]
    %v68 = vld [vmem:[#allocation2 + $0x50] sm:$0xff]
    %v69 = vld [vmem:[#allocation2 + $0x58] sm:$0xff]
    %v70 = vld [vmem:[#allocation2 + $0x60] sm:$0xff]
    %v71 = vld [vmem:[#allocation2 + $0x68] sm:$0xff]
    %v72 = vld [vmem:[#allocation2 + $0x70] sm:$0xff]
    %v73 = vld [vmem:[#allocation2 + $0x78] sm:$0xff]
    %v74 = vld [vmem:[#allocation2 + $0x80] sm:$0xff]
    %v75 = vld [vmem:[#allocation2 + $0x88] sm:$0xff]
    %v76 = vld [vmem:[#allocation2 + $0x90] sm:$0xff]
    %v77 = vld [vmem:[#allocation2 + $0x98] sm:$0xff]
    %v78 = vld [vmem:[#allocation2 + $0xa0] sm:$0xff]
    %v79 = vld [vmem:[#allocation2 + $0xa8] sm:$0xff]
    %v80 = vld [vmem:[#allocation2 + $0xb0] sm:$0xff]
    %v81 = vld [vmem:[#allocation2 + $0xb8] sm:$0xff]
    %v82 = vld [vmem:[#allocation2 + $0xc0] sm:$0xff]
    %v83 = vld [vmem:[#allocation2 + $0xc8] sm:$0xff]
    %v84 = vld [vmem:[#allocation2 + $0xd0] sm:$0xff]
    %v85 = vld [vmem:[#allocation2 + $0xd8] sm:$0xff]
    %v86 = vld [vmem:[#allocation2 + $0xe0] sm:$0xff]
    %v87 = vld [vmem:[#allocation2 + $0xe8] sm:$0xff]
    %v88 = vld [vmem:[#allocation2 + $0xf0] sm:$0xff]
    %v89 = vld [vmem:[#allocation2 + $0xf8] sm:$0xff]
    %v90 = vld [vmem:[#allocation2 + $0x100] sm:$0xff]
    %v91 = vld [vmem:[#allocation2 + $0x108] sm:$0xff]
    %v92 = vld [vmem:[#allocation2 + $0x110] sm:$0xff]
    %v93 = vld [vmem:[#allocation2 + $0x118] sm:$0xff]
    %v94 = vld [vmem:[#allocation2 + $0x120] sm:$0xff]
    %v95 = vld [vmem:[#allocation2 + $0x128] sm:$0xff]
    %v96 = vld [vmem:[#allocation2 + $0x130] sm:$0xff]
    %v97 = vld [vmem:[#allocation2 + $0x138] sm:$0xff]
    %v98 = vld [vmem:[#allocation2 + $0x140] sm:$0xff]
    %v99 = vld [vmem:[#allocation2 + $0x148] sm:$0xff]
    %v100 = vld [vmem:[#allocation2 + $0x150] sm:$0xff]
    %v101 = vld [vmem:[#allocation2 + $0x158] sm:$0xff]
    %v102 = vld [vmem:[#allocation2 + $0x160] sm:$0xff]
    %v103 = vld [vmem:[#allocation2 + $0x168] sm:$0xff]
    %v104 = vld [vmem:[#allocation2 + $0x170] sm:$0xff]
    %v105 = vld [vmem:[#allocation2 + $0x178] sm:$0xff]
    %v106 = vld [vmem:[#allocation2 + $0x180] sm:$0xff]
    %v107 = vld [vmem:[#allocation2 + $0x188] sm:$0xff]
    %v108 = vld [vmem:[#allocation2 + $0x190] sm:$0xff]
    %v109 = vld [vmem:[#allocation2 + $0x198] sm:$0xff]
    %v110 = vld [vmem:[#allocation2 + $0x1a0] sm:$0xff]
    %v111 = vld [vmem:[#allocation2 + $0x1a8] sm:$0xff]
    %v112 = vld [vmem:[#allocation2 + $0x1b0] sm:$0xff]
    %v113 = vld [vmem:[#allocation2 + $0x1b8] sm:$0xff]
    %v114 = vld [vmem:[#allocation2 + $0x1c0] sm:$0xff]
    %v115 = vld [vmem:[#allocation2 + $0x1c8] sm:$0xff]
    %v116 = vld [vmem:[#allocation2 + $0x1d0] sm:$0xff]
    %v117 = vld [vmem:[#allocation2 + $0x1d8] sm:$0xff]
    %v118 = vld [vmem:[#allocation2 + $0x1e0] sm:$0xff]
    %v119 = vld [vmem:[#allocation2 + $0x1e8] sm:$0xff]
    %v120 = vld [vmem:[#allocation2 + $0x1f0] sm:$0xff]
    %v121 = vld [vmem:[#allocation2 + $0x1f8] sm:$0xff]
    %v122 = vadd.f32 %v58, %v59
    %v123 = vadd.f32 %v122, %v60
    %v124 = vadd.f32 %v123, %v61
    %v125 = vadd.f32 %v124, %v62
    %v126 = vadd.f32 %v125, %v63
    %v127 = vadd.f32 %v126, %v64
    %v128 = vadd.f32 %v127, %v65
    %v129 = vadd.f32 %v128, %v66
    %v130 = vadd.f32 %v129, %v67
    %v131 = vadd.f32 %v130, %v68
    %v132 = vadd.f32 %v131, %v69
    %v133 = vadd.f32 %v132, %v70
    %v134 = vadd.f32 %v133, %v71
    %v135 = vadd.f32 %v134, %v72
    %v136 = vadd.f32 %v135, %v73
    %137 = vadd.xlane.f32.xlu0 %v136
    %v138 = vpop.xlane.xlu0 %137
    %v139 = vadd.f32 %v74, %v75
    %v140 = vadd.f32 %v139, %v76
    %v141 = vadd.f32 %v140, %v77
    %v142 = vadd.f32 %v141, %v78
    %v143 = vadd.f32 %v142, %v79
    %v144 = vadd.f32 %v143, %v80
    %v145 = vadd.f32 %v144, %v81
    %v146 = vadd.f32 %v145, %v82
    %v147 = vadd.f32 %v146, %v83
    %v148 = vadd.f32 %v147, %v84
    %v149 = vadd.f32 %v148, %v85
    %v150 = vadd.f32 %v149, %v86
    %v151 = vadd.f32 %v150, %v87
    %v152 = vadd.f32 %v151, %v88
    %v153 = vadd.f32 %v152, %v89
    %154 = vadd.xlane.f32.xlu0 %v153
    %v155 = vpop.xlane.xlu0 %154
    %v156 = vadd.f32 %v90, %v91
    %v157 = vadd.f32 %v156, %v92
    %v158 = vadd.f32 %v157, %v93
    %v159 = vadd.f32 %v158, %v94
    %v160 = vadd.f32 %v159, %v95
    %v161 = vadd.f32 %v160, %v96
    %v162 = vadd.f32 %v161, %v97
    %v163 = vadd.f32 %v162, %v98
    %v164 = vadd.f32 %v163, %v99
    %v165 = vadd.f32 %v164, %v100
    %v166 = vadd.f32 %v165, %v101
    %v167 = vadd.f32 %v166, %v102
    %v168 = vadd.f32 %v167, %v103
    %v169 = vadd.f32 %v168, %v104
    %v170 = vadd.f32 %v169, %v105
    %171 = vadd.xlane.f32.xlu0 %v170
    %v172 = vpop.xlane.xlu0 %171
    %v173 = vadd.f32 %v106, %v107
    %v174 = vadd.f32 %v173, %v108
    %v175 = vadd.f32 %v174, %v109
    %v176 = vadd.f32 %v175, %v110
    %v177 = vadd.f32 %v176, %v111
    %v178 = vadd.f32 %v177, %v112
    %v179 = vadd.f32 %v178, %v113
    %v180 = vadd.f32 %v179, %v114
    %v181 = vadd.f32 %v180, %v115
    %v182 = vadd.f32 %v181, %v116
    %v183 = vadd.f32 %v182, %v117
    %v184 = vadd.f32 %v183, %v118
    %v185 = vadd.f32 %v184, %v119
    %v186 = vadd.f32 %v185, %v120
    %v187 = vadd.f32 %v186, %v121
    %188 = vadd.xlane.f32.xlu0 %v187
    %v189 = vpop.xlane.xlu0 %188
    %v190 = vld [vmem:[#allocation5] sm:$0xff]
    %v191 = vld [vmem:[#allocation5 + $0x8] sm:$0xff]
    %v192 = vld [vmem:[#allocation5 + $0x10] sm:$0xff]
    %v193 = vld [vmem:[#allocation5 + $0x18] sm:$0xff]
    %v194 = vld [vmem:[#allocation5 + $0x20] sm:$0xff]
    %v195 = vld [vmem:[#allocation5 + $0x28] sm:$0xff]
    %v196 = vld [vmem:[#allocation5 + $0x30] sm:$0xff]
    %v197 = vld [vmem:[#allocation5 + $0x38] sm:$0xff]
    %v198 = vld [vmem:[#allocation5 + $0x40] sm:$0xff]
    %v199 = vld [vmem:[#allocation5 + $0x48] sm:$0xff]
    %v200 = vld [vmem:[#allocation5 + $0x50] sm:$0xff]
    %v201 = vld [vmem:[#allocation5 + $0x58] sm:$0xff]
    %v202 = vld [vmem:[#allocation5 + $0x60] sm:$0xff]
    %v203 = vld [vmem:[#allocation5 + $0x68] sm:$0xff]
    %v204 = vld [vmem:[#allocation5 + $0x70] sm:$0xff]
    %v205 = vld [vmem:[#allocation5 + $0x78] sm:$0xff]
    %v206 = vld [vmem:[#allocation5 + $0x80] sm:$0xff]
    %v207 = vld [vmem:[#allocation5 + $0x88] sm:$0xff]
    %v208 = vld [vmem:[#allocation5 + $0x90] sm:$0xff]
    %v209 = vld [vmem:[#allocation5 + $0x98] sm:$0xff]
    %v210 = vld [vmem:[#allocation5 + $0xa0] sm:$0xff]
    %v211 = vld [vmem:[#allocation5 + $0xa8] sm:$0xff]
    %v212 = vld [vmem:[#allocation5 + $0xb0] sm:$0xff]
    %v213 = vld [vmem:[#allocation5 + $0xb8] sm:$0xff]
    %v214 = vld [vmem:[#allocation5 + $0xc0] sm:$0xff]
    %v215 = vld [vmem:[#allocation5 + $0xc8] sm:$0xff]
    %v216 = vld [vmem:[#allocation5 + $0xd0] sm:$0xff]
    %v217 = vld [vmem:[#allocation5 + $0xd8] sm:$0xff]
    %v218 = vld [vmem:[#allocation5 + $0xe0] sm:$0xff]
    %v219 = vld [vmem:[#allocation5 + $0xe8] sm:$0xff]
    %v220 = vld [vmem:[#allocation5 + $0xf0] sm:$0xff]
    %v221 = vld [vmem:[#allocation5 + $0xf8] sm:$0xff]
    %v222 = vld [vmem:[#allocation5 + $0x100] sm:$0xff]
    %v223 = vld [vmem:[#allocation5 + $0x108] sm:$0xff]
    %v224 = vld [vmem:[#allocation5 + $0x110] sm:$0xff]
    %v225 = vld [vmem:[#allocation5 + $0x118] sm:$0xff]
    %v226 = vld [vmem:[#allocation5 + $0x120] sm:$0xff]
    %v227 = vld [vmem:[#allocation5 + $0x128] sm:$0xff]
    %v228 = vld [vmem:[#allocation5 + $0x130] sm:$0xff]
    %v229 = vld [vmem:[#allocation5 + $0x138] sm:$0xff]
    %v230 = vld [vmem:[#allocation5 + $0x140] sm:$0xff]
    %v231 = vld [vmem:[#allocation5 + $0x148] sm:$0xff]
    %v232 = vld [vmem:[#allocation5 + $0x150] sm:$0xff]
    %v233 = vld [vmem:[#allocation5 + $0x158] sm:$0xff]
    %v234 = vld [vmem:[#allocation5 + $0x160] sm:$0xff]
    %v235 = vld [vmem:[#allocation5 + $0x168] sm:$0xff]
    %v236 = vld [vmem:[#allocation5 + $0x170] sm:$0xff]
    %v237 = vld [vmem:[#allocation5 + $0x178] sm:$0xff]
    %v238 = vld [vmem:[#allocation5 + $0x180] sm:$0xff]
    %v239 = vld [vmem:[#allocation5 + $0x188] sm:$0xff]
    %v240 = vld [vmem:[#allocation5 + $0x190] sm:$0xff]
    %v241 = vld [vmem:[#allocation5 + $0x198] sm:$0xff]
    %v242 = vld [vmem:[#allocation5 + $0x1a0] sm:$0xff]
    %v243 = vld [vmem:[#allocation5 + $0x1a8] sm:$0xff]
    %v244 = vld [vmem:[#allocation5 + $0x1b0] sm:$0xff]
    %v245 = vld [vmem:[#allocation5 + $0x1b8] sm:$0xff]
    %v246 = vld [vmem:[#allocation5 + $0x1c0] sm:$0xff]
    %v247 = vld [vmem:[#allocation5 + $0x1c8] sm:$0xff]
    %v248 = vld [vmem:[#allocation5 + $0x1d0] sm:$0xff]
    %v249 = vld [vmem:[#allocation5 + $0x1d8] sm:$0xff]
    %v250 = vld [vmem:[#allocation5 + $0x1e0] sm:$0xff]
    %v251 = vld [vmem:[#allocation5 + $0x1e8] sm:$0xff]
    %v252 = vld [vmem:[#allocation5 + $0x1f0] sm:$0xff]
    %v253 = vld [vmem:[#allocation5 + $0x1f8] sm:$0xff]
    %v254 = vadd.f32 %v190, %v191
    %v255 = vadd.f32 %v254, %v192
    %v256 = vadd.f32 %v255, %v193
    %v257 = vadd.f32 %v256, %v194
    %v258 = vadd.f32 %v257, %v195
    %v259 = vadd.f32 %v258, %v196
    %v260 = vadd.f32 %v259, %v197
    %v261 = vadd.f32 %v260, %v198
    %v262 = vadd.f32 %v261, %v199
    %v263 = vadd.f32 %v262, %v200
    %v264 = vadd.f32 %v263, %v201
    %v265 = vadd.f32 %v264, %v202
    %v266 = vadd.f32 %v265, %v203
    %v267 = vadd.f32 %v266, %v204
    %v268 = vadd.f32 %v267, %v205
    %269 = vadd.xlane.f32.xlu0 %v268
    %v270 = vpop.xlane.xlu0 %269
    %v271 = vadd.f32 %v206, %v207
    %v272 = vadd.f32 %v271, %v208
    %v273 = vadd.f32 %v272, %v209
    %v274 = vadd.f32 %v273, %v210
    %v275 = vadd.f32 %v274, %v211
    %v276 = vadd.f32 %v275, %v212
    %v277 = vadd.f32 %v276, %v213
    %v278 = vadd.f32 %v277, %v214
    %v279 = vadd.f32 %v278, %v215
    %v280 = vadd.f32 %v279, %v216
    %v281 = vadd.f32 %v280, %v217
    %v282 = vadd.f32 %v281, %v218
    %v283 = vadd.f32 %v282, %v219
    %v284 = vadd.f32 %v283, %v220
    %v285 = vadd.f32 %v284, %v221
    %286 = vadd.xlane.f32.xlu0 %v285
    %v287 = vpop.xlane.xlu0 %286
    %v288 = vadd.f32 %v222, %v223
    %v289 = vadd.f32 %v288, %v224
    %v290 = vadd.f32 %v289, %v225
    %v291 = vadd.f32 %v290, %v226
    %v292 = vadd.f32 %v291, %v227
    %v293 = vadd.f32 %v292, %v228
    %v294 = vadd.f32 %v293, %v229
    %v295 = vadd.f32 %v294, %v230
    %v296 = vadd.f32 %v295, %v231
    %v297 = vadd.f32 %v296, %v232
    %v298 = vadd.f32 %v297, %v233
    %v299 = vadd.f32 %v298, %v234
    %v300 = vadd.f32 %v299, %v235
    %v301 = vadd.f32 %v300, %v236
    %v302 = vadd.f32 %v301, %v237
    %303 = vadd.xlane.f32.xlu0 %v302
    %v304 = vpop.xlane.xlu0 %303
    %v305 = vadd.f32 %v238, %v239
    %v306 = vadd.f32 %v305, %v240
    %v307 = vadd.f32 %v306, %v241
    %v308 = vadd.f32 %v307, %v242
    %v309 = vadd.f32 %v308, %v243
    %v310 = vadd.f32 %v309, %v244
    %v311 = vadd.f32 %v310, %v245
    %v312 = vadd.f32 %v311, %v246
    %v313 = vadd.f32 %v312, %v247
    %v314 = vadd.f32 %v313, %v248
    %v315 = vadd.f32 %v314, %v249
    %v316 = vadd.f32 %v315, %v250
    %v317 = vadd.f32 %v316, %v251
    %v318 = vadd.f32 %v317, %v252
    %v319 = vadd.f32 %v318, %v253
    %320 = vadd.xlane.f32.xlu0 %v319
    %v321 = vpop.xlane.xlu0 %320
    %v322 = vadd.f32 %v138, %v270
    %v323 = vadd.f32 %v155, %v287
    %v324 = vadd.f32 %v172, %v304
    %v325 = vadd.f32 %v189, %v321
    %v326 = vmul.f32 %v322, 0.00048828125
    %v327 = vmul.f32 %v323, 0.00048828125
    %v328 = vmul.f32 %v324, 0.00048828125
    %v329 = vmul.f32 %v325, 0.00048828125
    %v330 = vld [vmem:[%s2] sm:$0xff]
    %v331 = vld [vmem:[%s2 + $0x8] sm:$0xff]
    %v332 = vld [vmem:[%s3] sm:$0x1]
    %v334 = vlaneseq
    %v335 = vshrl.u32 %v334, 7
    %v336 = vsub.s32 0, %v335
    %v337 = vrot.slane %v332, %v336
    %v343 = vlaneseq
    %v344 = vand.u32 %v343, 127
    %v345 = vlaneseq
    %v346 = vshrl.u32 %v345, 7
    %v347 = vsub.s32 %v344, %v346
    %v348 = vrot.slane %v326, %v347
    %v349 = vadd.s32 %v344, 4294967288
    %v350 = vlaneseq
    %v351 = vshrl.u32 %v350, 7
    %v352 = vsub.s32 %v349, %v351
    %v353 = vrot.slane %v327, %v352
    %vm354 = vcmask 130112
    %v355 = vsel %vm354, %v353, %v348
    %v356 = vlaneseq
    %v357 = vshrl.u32 %v356, 7
    %v358 = vsub.s32 %v344, %v357
    %v359 = vrot.slane %v328, %v358
    %v360 = vlaneseq
    %v361 = vshrl.u32 %v360, 7
    %v362 = vsub.s32 %v349, %v361
    %v363 = vrot.slane %v329, %v362
    %v364 = vsel %vm354, %v363, %v359
    %vm365 = vcmask 1041409
    %v366 = vsel %vm365, %v364, %v355
    %vm367 = vcmask 130048
    %v368 = vsel %vm367, %v366, 0
    %370 = vmatprep.subr.mxu0 0.0
    %371 = vmatpush1.msra.mxu0 0.0
    %372 = vmatprep.subr.mxu0 0.0
    %373 = vmatpush1.msra.mxu0 0.0
    %374 = vmatprep.subr.mxu0 0.0
    %375 = vmatpush1.msra.mxu0 0.0
    %376 = vmatprep.subr.mxu0 0.0
    %377 = vmatpush1.msra.mxu0 0.0
    %378 = vmatprep.subr.mxu0 0.0
    %379 = vmatpush1.msra.mxu0 0.0
    %380 = vmatprep.subr.mxu0 0.0
    %381 = vmatpush1.msra.mxu0 0.0
    %382 = vmatprep.subr.mxu0 0.0
    %383 = vmatpush1.msra.mxu0 0.0
    %384 = vmatprep.subr.mxu0 0.0
    %385 = vmatpush1.msra.mxu0 0.0
    %386 = vmatprep.subr.mxu0 0.0
    %387 = vmatpush1.msra.mxu0 0.0
    %388 = vmatprep.subr.mxu0 0.0
    %389 = vmatpush1.msra.mxu0 0.0
    %390 = vmatprep.subr.mxu0 0.0
    %391 = vmatpush1.msra.mxu0 0.0
    %392 = vmatprep.subr.mxu0 0.0
    %393 = vmatpush1.msra.mxu0 0.0
    %394 = vmatprep.subr.mxu0 0.0
    %395 = vmatpush1.msra.mxu0 0.0
    %396 = vmatprep.subr.mxu0 0.0
    %397 = vmatpush1.msra.mxu0 0.0
    %398 = vmatprep.subr.mxu0 0.0
    %v399 = vand.u32 %v331, 4294901760
    %400 = vmatpush1.msra.mxu0 %v399
    %401 = vmatprep.subr.mxu0 0.0
    %v402 = vand.u32 %v330, 4294901760
    %403 = vmatpush1.msra.mxu0 %v402
    %404 = vmatprep.subr.mxu0 0.0
    %405 = vmatpush2.msra.mxu0 0.0
    %406 = vmatprep.subr.mxu0 0.0
    %407 = vmatpush2.msra.mxu0 0.0
    %408 = vmatprep.subr.mxu0 0.0
    %409 = vmatpush2.msra.mxu0 0.0
    %410 = vmatprep.subr.mxu0 0.0
    %411 = vmatpush2.msra.mxu0 0.0
    %412 = vmatprep.subr.mxu0 0.0
    %413 = vmatpush2.msra.mxu0 0.0
    %414 = vmatprep.subr.mxu0 0.0
    %415 = vmatpush2.msra.mxu0 0.0
    %416 = vmatprep.subr.mxu0 0.0
    %417 = vmatpush2.msra.mxu0 0.0
    %418 = vmatprep.subr.mxu0 0.0
    %419 = vmatpush2.msra.mxu0 0.0
    %420 = vmatprep.subr.mxu0 0.0
    %421 = vmatpush2.msra.mxu0 0.0
    %422 = vmatprep.subr.mxu0 0.0
    %423 = vmatpush2.msra.mxu0 0.0
    %424 = vmatprep.subr.mxu0 0.0
    %425 = vmatpush2.msra.mxu0 0.0
    %426 = vmatprep.subr.mxu0 0.0
    %427 = vmatpush2.msra.mxu0 0.0
    %428 = vmatprep.subr.mxu0 0.0
    %429 = vmatpush2.msra.mxu0 0.0
    %430 = vmatprep.subr.mxu0 0.0
    %431 = vmatpush2.msra.mxu0 0.0
    %432 = vmatprep.subr.mxu0 0.0
    %433 = vmatpush2.msra.mxu0 0.0
    %434 = vmatprep.subr.mxu0 0.0
    %435 = vmatpush2.msra.mxu0 0.0
    %436 = vmatprep.mubr.f32.mxu0 0.0
    %v437 = vand.u32 %v368, 4294901760
    %v438 = vsub.f32 %v368, %v437
    %v439 = vand.u32 %v438, 4294901760
    %v440 = vsub.f32 %v438, %v439
    %v441 = vand.u32 %v440, 4294901760
    %442 = vmatmul.mubr.f32.gmra.mxu0 %v441
    %v443 = vpop.f32.mrf.mxu0
    %v444 = vadd.f32 %v337, %v443
    %v445 = vpop.f32.mrf.mxu0
    %446 = vdwg.mxu0
    %447 = vmatprep.subr.mxu0 0.0
    %448 = vmatpush1.msra.mxu0 0.0
    %449 = vmatprep.subr.mxu0 0.0
    %450 = vmatpush1.msra.mxu0 0.0
    %451 = vmatprep.subr.mxu0 0.0
    %452 = vmatpush1.msra.mxu0 0.0
    %453 = vmatprep.subr.mxu0 0.0
    %454 = vmatpush1.msra.mxu0 0.0
    %455 = vmatprep.subr.mxu0 0.0
    %456 = vmatpush1.msra.mxu0 0.0
    %457 = vmatprep.subr.mxu0 0.0
    %458 = vmatpush1.msra.mxu0 0.0
    %459 = vmatprep.subr.mxu0 0.0
    %460 = vmatpush1.msra.mxu0 0.0
    %461 = vmatprep.subr.mxu0 0.0
    %462 = vmatpush1.msra.mxu0 0.0
    %463 = vmatprep.subr.mxu0 0.0
    %464 = vmatpush1.msra.mxu0 0.0
    %465 = vmatprep.subr.mxu0 0.0
    %466 = vmatpush1.msra.mxu0 0.0
    %467 = vmatprep.subr.mxu0 0.0
    %468 = vmatpush1.msra.mxu0 0.0
    %469 = vmatprep.subr.mxu0 0.0
    %470 = vmatpush1.msra.mxu0 0.0
    %471 = vmatprep.subr.mxu0 0.0
    %472 = vmatpush1.msra.mxu0 0.0
    %473 = vmatprep.subr.mxu0 0.0
    %474 = vmatpush1.msra.mxu0 0.0
    %475 = vmatprep.subr.mxu0 0.0
    %v476 = vand.u32 %v331, 4294901760
    %v477 = vsub.f32 %v331, %v476
    %v478 = vand.u32 %v477, 4294901760
    %v479 = vsub.f32 %v477, %v478
    %v480 = vand.u32 %v479, 4294901760
    %481 = vmatpush1.msra.mxu0 %v480
    %482 = vmatprep.subr.mxu0 0.0
    %v483 = vand.u32 %v330, 4294901760
    %v484 = vsub.f32 %v330, %v483
    %v485 = vand.u32 %v484, 4294901760
    %v486 = vsub.f32 %v484, %v485
    %v487 = vand.u32 %v486, 4294901760
    %488 = vmatpush1.msra.mxu0 %v487
    %489 = vmatprep.subr.mxu0 0.0
    %490 = vmatpush2.msra.mxu0 0.0
    %491 = vmatprep.subr.mxu0 0.0
    %492 = vmatpush2.msra.mxu0 0.0
    %493 = vmatprep.subr.mxu0 0.0
    %494 = vmatpush2.msra.mxu0 0.0
    %495 = vmatprep.subr.mxu0 0.0
    %496 = vmatpush2.msra.mxu0 0.0
    %497 = vmatprep.subr.mxu0 0.0
    %498 = vmatpush2.msra.mxu0 0.0
    %499 = vmatprep.subr.mxu0 0.0
    %500 = vmatpush2.msra.mxu0 0.0
    %501 = vmatprep.subr.mxu0 0.0
    %502 = vmatpush2.msra.mxu0 0.0
    %503 = vmatprep.subr.mxu0 0.0
    %504 = vmatpush2.msra.mxu0 0.0
    %505 = vmatprep.subr.mxu0 0.0
    %506 = vmatpush2.msra.mxu0 0.0
    %507 = vmatprep.subr.mxu0 0.0
    %508 = vmatpush2.msra.mxu0 0.0
    %509 = vmatprep.subr.mxu0 0.0
    %510 = vmatpush2.msra.mxu0 0.0
    %511 = vmatprep.subr.mxu0 0.0
    %512 = vmatpush2.msra.mxu0 0.0
    %513 = vmatprep.subr.mxu0 0.0
    %514 = vmatpush2.msra.mxu0 0.0
    %515 = vmatprep.subr.mxu0 0.0
    %516 = vmatpush2.msra.mxu0 0.0
    %517 = vmatprep.subr.mxu0 0.0
    %518 = vmatpush2.msra.mxu0 0.0
    %519 = vmatprep.subr.mxu0 0.0
    %520 = vmatpush2.msra.mxu0 0.0
    %521 = vmatprep.mubr.f32.mxu0 0.0
    %v522 = vand.u32 %v368, 4294901760
    %523 = vmatmul.mubr.f32.gmra.mxu0 %v522
    %v524 = vpop.f32.mrf.mxu0
    %v525 = vadd.f32 %v444, %v524
    %v526 = vpop.f32.mrf.mxu0
    %527 = vdwg.mxu0
    %528 = vmatprep.subr.mxu0 0.0
    %529 = vmatpush1.msra.mxu0 0.0
    %530 = vmatprep.subr.mxu0 0.0
    %531 = vmatpush1.msra.mxu0 0.0
    %532 = vmatprep.subr.mxu0 0.0
    %533 = vmatpush1.msra.mxu0 0.0
    %534 = vmatprep.subr.mxu0 0.0
    %535 = vmatpush1.msra.mxu0 0.0
    %536 = vmatprep.subr.mxu0 0.0
    %537 = vmatpush1.msra.mxu0 0.0
    %538 = vmatprep.subr.mxu0 0.0
    %539 = vmatpush1.msra.mxu0 0.0
    %540 = vmatprep.subr.mxu0 0.0
    %541 = vmatpush1.msra.mxu0 0.0
    %542 = vmatprep.subr.mxu0 0.0
    %543 = vmatpush1.msra.mxu0 0.0
    %544 = vmatprep.subr.mxu0 0.0
    %545 = vmatpush1.msra.mxu0 0.0
    %546 = vmatprep.subr.mxu0 0.0
    %547 = vmatpush1.msra.mxu0 0.0
    %548 = vmatprep.subr.mxu0 0.0
    %549 = vmatpush1.msra.mxu0 0.0
    %550 = vmatprep.subr.mxu0 0.0
    %551 = vmatpush1.msra.mxu0 0.0
    %552 = vmatprep.subr.mxu0 0.0
    %553 = vmatpush1.msra.mxu0 0.0
    %554 = vmatprep.subr.mxu0 0.0
    %555 = vmatpush1.msra.mxu0 0.0
    %556 = vmatprep.subr.mxu0 0.0
    %v557 = vand.u32 %v331, 4294901760
    %v558 = vsub.f32 %v331, %v557
    %559 = vmatpush1.msra.mxu0 %v558
    %560 = vmatprep.subr.mxu0 0.0
    %v561 = vand.u32 %v330, 4294901760
    %v562 = vsub.f32 %v330, %v561
    %563 = vmatpush1.msra.mxu0 %v562
    %564 = vmatprep.subr.mxu0 0.0
    %565 = vmatpush2.msra.mxu0 0.0
    %566 = vmatprep.subr.mxu0 0.0
    %567 = vmatpush2.msra.mxu0 0.0
    %568 = vmatprep.subr.mxu0 0.0
    %569 = vmatpush2.msra.mxu0 0.0
    %570 = vmatprep.subr.mxu0 0.0
    %571 = vmatpush2.msra.mxu0 0.0
    %572 = vmatprep.subr.mxu0 0.0
    %573 = vmatpush2.msra.mxu0 0.0
    %574 = vmatprep.subr.mxu0 0.0
    %575 = vmatpush2.msra.mxu0 0.0
    %576 = vmatprep.subr.mxu0 0.0
    %577 = vmatpush2.msra.mxu0 0.0
    %578 = vmatprep.subr.mxu0 0.0
    %579 = vmatpush2.msra.mxu0 0.0
    %580 = vmatprep.subr.mxu0 0.0
    %581 = vmatpush2.msra.mxu0 0.0
    %582 = vmatprep.subr.mxu0 0.0
    %583 = vmatpush2.msra.mxu0 0.0
    %584 = vmatprep.subr.mxu0 0.0
    %585 = vmatpush2.msra.mxu0 0.0
    %586 = vmatprep.subr.mxu0 0.0
    %587 = vmatpush2.msra.mxu0 0.0
    %588 = vmatprep.subr.mxu0 0.0
    %589 = vmatpush2.msra.mxu0 0.0
    %590 = vmatprep.subr.mxu0 0.0
    %591 = vmatpush2.msra.mxu0 0.0
    %592 = vmatprep.subr.mxu0 0.0
    %593 = vmatpush2.msra.mxu0 0.0
    %594 = vmatprep.subr.mxu0 0.0
    %595 = vmatpush2.msra.mxu0 0.0
    %596 = vmatprep.mubr.f32.mxu0 0.0
    %v597 = vand.u32 %v368, 4294901760
    %v598 = vsub.f32 %v368, %v597
    %599 = vmatmul.mubr.f32.gmra.mxu0 %v598
    %v600 = vpop.f32.mrf.mxu0
    %v601 = vadd.f32 %v525, %v600
    %v602 = vpop.f32.mrf.mxu0
    %603 = vdwg.mxu0
    %604 = vmatprep.subr.mxu0 0.0
    %605 = vmatpush1.msra.mxu0 0.0
    %606 = vmatprep.subr.mxu0 0.0
    %607 = vmatpush1.msra.mxu0 0.0
    %608 = vmatprep.subr.mxu0 0.0
    %609 = vmatpush1.msra.mxu0 0.0
    %610 = vmatprep.subr.mxu0 0.0
    %611 = vmatpush1.msra.mxu0 0.0
    %612 = vmatprep.subr.mxu0 0.0
    %613 = vmatpush1.msra.mxu0 0.0
    %614 = vmatprep.subr.mxu0 0.0
    %615 = vmatpush1.msra.mxu0 0.0
    %616 = vmatprep.subr.mxu0 0.0
    %617 = vmatpush1.msra.mxu0 0.0
    %618 = vmatprep.subr.mxu0 0.0
    %619 = vmatpush1.msra.mxu0 0.0
    %620 = vmatprep.subr.mxu0 0.0
    %621 = vmatpush1.msra.mxu0 0.0
    %622 = vmatprep.subr.mxu0 0.0
    %623 = vmatpush1.msra.mxu0 0.0
    %624 = vmatprep.subr.mxu0 0.0
    %625 = vmatpush1.msra.mxu0 0.0
    %626 = vmatprep.subr.mxu0 0.0
    %627 = vmatpush1.msra.mxu0 0.0
    %628 = vmatprep.subr.mxu0 0.0
    %629 = vmatpush1.msra.mxu0 0.0
    %630 = vmatprep.subr.mxu0 0.0
    %631 = vmatpush1.msra.mxu0 0.0
    %632 = vmatprep.subr.mxu0 0.0
    %v633 = vand.u32 %v331, 4294901760
    %634 = vmatpush1.msra.mxu0 %v633
    %635 = vmatprep.subr.mxu0 0.0
    %v636 = vand.u32 %v330, 4294901760
    %637 = vmatpush1.msra.mxu0 %v636
    %638 = vmatprep.subr.mxu0 0.0
    %639 = vmatpush2.msra.mxu0 0.0
    %640 = vmatprep.subr.mxu0 0.0
    %641 = vmatpush2.msra.mxu0 0.0
    %642 = vmatprep.subr.mxu0 0.0
    %643 = vmatpush2.msra.mxu0 0.0
    %644 = vmatprep.subr.mxu0 0.0
    %645 = vmatpush2.msra.mxu0 0.0
    %646 = vmatprep.subr.mxu0 0.0
    %647 = vmatpush2.msra.mxu0 0.0
    %648 = vmatprep.subr.mxu0 0.0
    %649 = vmatpush2.msra.mxu0 0.0
    %650 = vmatprep.subr.mxu0 0.0
    %651 = vmatpush2.msra.mxu0 0.0
    %652 = vmatprep.subr.mxu0 0.0
    %653 = vmatpush2.msra.mxu0 0.0
    %654 = vmatprep.subr.mxu0 0.0
    %655 = vmatpush2.msra.mxu0 0.0
    %656 = vmatprep.subr.mxu0 0.0
    %657 = vmatpush2.msra.mxu0 0.0
    %658 = vmatprep.subr.mxu0 0.0
    %659 = vmatpush2.msra.mxu0 0.0
    %660 = vmatprep.subr.mxu0 0.0
    %661 = vmatpush2.msra.mxu0 0.0
    %662 = vmatprep.subr.mxu0 0.0
    %663 = vmatpush2.msra.mxu0 0.0
    %664 = vmatprep.subr.mxu0 0.0
    %665 = vmatpush2.msra.mxu0 0.0
    %666 = vmatprep.subr.mxu0 0.0
    %667 = vmatpush2.msra.mxu0 0.0
    %668 = vmatprep.subr.mxu0 0.0
    %669 = vmatpush2.msra.mxu0 0.0
    %670 = vmatprep.mubr.f32.mxu0 0.0
    %v671 = vand.u32 %v368, 4294901760
    %v672 = vsub.f32 %v368, %v671
    %v673 = vand.u32 %v672, 4294901760
    %674 = vmatmul.mubr.f32.gmra.mxu0 %v673
    %v675 = vpop.f32.mrf.mxu0
    %v676 = vadd.f32 %v601, %v675
    %v677 = vpop.f32.mrf.mxu0
    %678 = vdwg.mxu0
    %679 = vmatprep.subr.mxu0 0.0
    %680 = vmatpush1.msra.mxu0 0.0
    %681 = vmatprep.subr.mxu0 0.0
    %682 = vmatpush1.msra.mxu0 0.0
    %683 = vmatprep.subr.mxu0 0.0
    %684 = vmatpush1.msra.mxu0 0.0
    %685 = vmatprep.subr.mxu0 0.0
    %686 = vmatpush1.msra.mxu0 0.0
    %687 = vmatprep.subr.mxu0 0.0
    %688 = vmatpush1.msra.mxu0 0.0
    %689 = vmatprep.subr.mxu0 0.0
    %690 = vmatpush1.msra.mxu0 0.0
    %691 = vmatprep.subr.mxu0 0.0
    %692 = vmatpush1.msra.mxu0 0.0
    %693 = vmatprep.subr.mxu0 0.0
    %694 = vmatpush1.msra.mxu0 0.0
    %695 = vmatprep.subr.mxu0 0.0
    %696 = vmatpush1.msra.mxu0 0.0
    %697 = vmatprep.subr.mxu0 0.0
    %698 = vmatpush1.msra.mxu0 0.0
    %699 = vmatprep.subr.mxu0 0.0
    %700 = vmatpush1.msra.mxu0 0.0
    %701 = vmatprep.subr.mxu0 0.0
    %702 = vmatpush1.msra.mxu0 0.0
    %703 = vmatprep.subr.mxu0 0.0
    %704 = vmatpush1.msra.mxu0 0.0
    %705 = vmatprep.subr.mxu0 0.0
    %706 = vmatpush1.msra.mxu0 0.0
    %707 = vmatprep.subr.mxu0 0.0
    %v708 = vand.u32 %v331, 4294901760
    %v709 = vsub.f32 %v331, %v708
    %v710 = vand.u32 %v709, 4294901760
    %711 = vmatpush1.msra.mxu0 %v710
    %712 = vmatprep.subr.mxu0 0.0
    %v713 = vand.u32 %v330, 4294901760
    %v714 = vsub.f32 %v330, %v713
    %v715 = vand.u32 %v714, 4294901760
    %716 = vmatpush1.msra.mxu0 %v715
    %717 = vmatprep.subr.mxu0 0.0
    %718 = vmatpush2.msra.mxu0 0.0
    %719 = vmatprep.subr.mxu0 0.0
    %720 = vmatpush2.msra.mxu0 0.0
    %721 = vmatprep.subr.mxu0 0.0
    %722 = vmatpush2.msra.mxu0 0.0
    %723 = vmatprep.subr.mxu0 0.0
    %724 = vmatpush2.msra.mxu0 0.0
    %725 = vmatprep.subr.mxu0 0.0
    %726 = vmatpush2.msra.mxu0 0.0
    %727 = vmatprep.subr.mxu0 0.0
    %728 = vmatpush2.msra.mxu0 0.0
    %729 = vmatprep.subr.mxu0 0.0
    %730 = vmatpush2.msra.mxu0 0.0
    %731 = vmatprep.subr.mxu0 0.0
    %732 = vmatpush2.msra.mxu0 0.0
    %733 = vmatprep.subr.mxu0 0.0
    %734 = vmatpush2.msra.mxu0 0.0
    %735 = vmatprep.subr.mxu0 0.0
    %736 = vmatpush2.msra.mxu0 0.0
    %737 = vmatprep.subr.mxu0 0.0
    %738 = vmatpush2.msra.mxu0 0.0
    %739 = vmatprep.subr.mxu0 0.0
    %740 = vmatpush2.msra.mxu0 0.0
    %741 = vmatprep.subr.mxu0 0.0
    %742 = vmatpush2.msra.mxu0 0.0
    %743 = vmatprep.subr.mxu0 0.0
    %744 = vmatpush2.msra.mxu0 0.0
    %745 = vmatprep.subr.mxu0 0.0
    %746 = vmatpush2.msra.mxu0 0.0
    %747 = vmatprep.subr.mxu0 0.0
    %748 = vmatpush2.msra.mxu0 0.0
    %749 = vmatprep.mubr.f32.mxu0 0.0
    %v750 = vand.u32 %v368, 4294901760
    %751 = vmatmul.mubr.f32.gmra.mxu0 %v750
    %v752 = vpop.f32.mrf.mxu0
    %v753 = vadd.f32 %v676, %v752
    %v754 = vpop.f32.mrf.mxu0
    %755 = vdwg.mxu0
    %756 = vmatprep.subr.mxu0 0.0
    %757 = vmatpush1.msra.mxu0 0.0
    %758 = vmatprep.subr.mxu0 0.0
    %759 = vmatpush1.msra.mxu0 0.0
    %760 = vmatprep.subr.mxu0 0.0
    %761 = vmatpush1.msra.mxu0 0.0
    %762 = vmatprep.subr.mxu0 0.0
    %763 = vmatpush1.msra.mxu0 0.0
    %764 = vmatprep.subr.mxu0 0.0
    %765 = vmatpush1.msra.mxu0 0.0
    %766 = vmatprep.subr.mxu0 0.0
    %767 = vmatpush1.msra.mxu0 0.0
    %768 = vmatprep.subr.mxu0 0.0
    %769 = vmatpush1.msra.mxu0 0.0
    %770 = vmatprep.subr.mxu0 0.0
    %771 = vmatpush1.msra.mxu0 0.0
    %772 = vmatprep.subr.mxu0 0.0
    %773 = vmatpush1.msra.mxu0 0.0
    %774 = vmatprep.subr.mxu0 0.0
    %775 = vmatpush1.msra.mxu0 0.0
    %776 = vmatprep.subr.mxu0 0.0
    %777 = vmatpush1.msra.mxu0 0.0
    %778 = vmatprep.subr.mxu0 0.0
    %779 = vmatpush1.msra.mxu0 0.0
    %780 = vmatprep.subr.mxu0 0.0
    %781 = vmatpush1.msra.mxu0 0.0
    %782 = vmatprep.subr.mxu0 0.0
    %783 = vmatpush1.msra.mxu0 0.0
    %784 = vmatprep.subr.mxu0 0.0
    %v785 = vand.u32 %v331, 4294901760
    %786 = vmatpush1.msra.mxu0 %v785
    %787 = vmatprep.subr.mxu0 0.0
    %v788 = vand.u32 %v330, 4294901760
    %789 = vmatpush1.msra.mxu0 %v788
    %790 = vmatprep.subr.mxu0 0.0
    %791 = vmatpush2.msra.mxu0 0.0
    %792 = vmatprep.subr.mxu0 0.0
    %793 = vmatpush2.msra.mxu0 0.0
    %794 = vmatprep.subr.mxu0 0.0
    %795 = vmatpush2.msra.mxu0 0.0
    %796 = vmatprep.subr.mxu0 0.0
    %797 = vmatpush2.msra.mxu0 0.0
    %798 = vmatprep.subr.mxu0 0.0
    %799 = vmatpush2.msra.mxu0 0.0
    %800 = vmatprep.subr.mxu0 0.0
    %801 = vmatpush2.msra.mxu0 0.0
    %802 = vmatprep.subr.mxu0 0.0
    %803 = vmatpush2.msra.mxu0 0.0
    %804 = vmatprep.subr.mxu0 0.0
    %805 = vmatpush2.msra.mxu0 0.0
    %806 = vmatprep.subr.mxu0 0.0
    %807 = vmatpush2.msra.mxu0 0.0
    %808 = vmatprep.subr.mxu0 0.0
    %809 = vmatpush2.msra.mxu0 0.0
    %810 = vmatprep.subr.mxu0 0.0
    %811 = vmatpush2.msra.mxu0 0.0
    %812 = vmatprep.subr.mxu0 0.0
    %813 = vmatpush2.msra.mxu0 0.0
    %814 = vmatprep.subr.mxu0 0.0
    %815 = vmatpush2.msra.mxu0 0.0
    %816 = vmatprep.subr.mxu0 0.0
    %817 = vmatpush2.msra.mxu0 0.0
    %818 = vmatprep.subr.mxu0 0.0
    %819 = vmatpush2.msra.mxu0 0.0
    %820 = vmatprep.subr.mxu0 0.0
    %821 = vmatpush2.msra.mxu0 0.0
    %822 = vmatprep.mubr.f32.mxu0 0.0
    %v823 = vand.u32 %v368, 4294901760
    %824 = vmatmul.mubr.f32.gmra.mxu0 %v823
    %v825 = vpop.f32.mrf.mxu0
    %v826 = vadd.f32 %v753, %v825
    %v827 = vpop.f32.mrf.mxu0
    %828 = vdwg.mxu0
    %vm829 = vcmask 254976
    %v830 = vsel %vm829, %v826, 0.0
    %v831 = vrot.slane %v830, 4
    %v832 = vadd.f32 %v830, %v831
    %v833 = vrot.slane %v832, 2
    %v834 = vadd.f32 %v832, %v833
    %v835 = vrot.slane %v834, 1
    %v836 = vadd.f32 %v834, %v835
    %v837 = vrcp.pop 2.0
    %v838 = vmul.f32 %v836, %v837
    %v839 = vsub.f32 %v826, %v838
    %v840 = vmul.f32 %v839, %v839
    %v841 = vsel %vm829, %v840, 0.0
    %v842 = vrot.slane %v841, 4
    %v843 = vadd.f32 %v841, %v842
    %v844 = vrot.slane %v843, 2
    %v845 = vadd.f32 %v843, %v844
    %v846 = vrot.slane %v845, 1
    %v847 = vadd.f32 %v845, %v846
    %v848 = vmul.f32 %v847, %v837
    %v849 = vadd.f32 %v848, 1e-05
    %v850 = vrsqrt.pop %v849
    %v851 = vmul.f32 %v839, %v850
    %v852 = vld [vmem:[%s4] sm:$0x1]
    %v854 = vlaneseq
    %v855 = vshrl.u32 %v854, 7
    %v856 = vsub.s32 0, %v855
    %v857 = vrot.slane %v852, %v856
    %v859 = vmul.f32 %v851, %v857
    %v860 = vld [vmem:[%s5] sm:$0x1]
    %v862 = vlaneseq
    %v863 = vshrl.u32 %v862, 7
    %v864 = vsub.s32 0, %v863
    %v865 = vrot.slane %v860, %v864
    %v867 = vadd.f32 %v859, %v865
    %v868 = vmax.f32 %v867, 0.0
    %v869 = vld [vmem:[%s6] sm:$0xff]
    %v870 = vld [vmem:[%s6 + $0x8] sm:$0xff]
    %v871 = vld [vmem:[%s6 + $0x10] sm:$0xff]
    %v872 = vld [vmem:[%s6 + $0x18] sm:$0xff]
    %v873 = vld [vmem:[%s7] sm:$0x1]
    %v875 = vlaneseq
    %v876 = vshrl.u32 %v875, 7
    %v877 = vsub.s32 0, %v876
    %v878 = vrot.slane %v873, %v877
    %vm880 = vcmask 261120
    %v882 = vsel %vm880, %v868, 0
    %884 = vmatprep.subr.mxu0 0.0
    %885 = vmatpush1.msra.mxu0 0.0
    %886 = vmatprep.subr.mxu0 0.0
    %887 = vmatpush1.msra.mxu0 0.0
    %888 = vmatprep.subr.mxu0 0.0
    %889 = vmatpush1.msra.mxu0 0.0
    %890 = vmatprep.subr.mxu0 0.0
    %891 = vmatpush1.msra.mxu0 0.0
    %892 = vmatprep.subr.mxu0 0.0
    %893 = vmatpush1.msra.mxu0 0.0
    %894 = vmatprep.subr.mxu0 0.0
    %895 = vmatpush1.msra.mxu0 0.0
    %896 = vmatprep.subr.mxu0 0.0
    %897 = vmatpush1.msra.mxu0 0.0
    %898 = vmatprep.subr.mxu0 0.0
    %899 = vmatpush1.msra.mxu0 0.0
    %900 = vmatprep.subr.mxu0 0.0
    %901 = vmatpush1.msra.mxu0 0.0
    %902 = vmatprep.subr.mxu0 0.0
    %903 = vmatpush1.msra.mxu0 0.0
    %904 = vmatprep.subr.mxu0 0.0
    %905 = vmatpush1.msra.mxu0 0.0
    %906 = vmatprep.subr.mxu0 0.0
    %907 = vmatpush1.msra.mxu0 0.0
    %908 = vmatprep.subr.mxu0 0.0
    %v909 = vand.u32 %v872, 4294901760
    %910 = vmatpush1.msra.mxu0 %v909
    %911 = vmatprep.subr.mxu0 0.0
    %v912 = vand.u32 %v871, 4294901760
    %913 = vmatpush1.msra.mxu0 %v912
    %914 = vmatprep.subr.mxu0 0.0
    %v915 = vand.u32 %v870, 4294901760
    %916 = vmatpush1.msra.mxu0 %v915
    %917 = vmatprep.subr.mxu0 0.0
    %v918 = vand.u32 %v869, 4294901760
    %919 = vmatpush1.msra.mxu0 %v918
    %920 = vmatprep.subr.mxu0 0.0
    %921 = vmatpush2.msra.mxu0 0.0
    %922 = vmatprep.subr.mxu0 0.0
    %923 = vmatpush2.msra.mxu0 0.0
    %924 = vmatprep.subr.mxu0 0.0
    %925 = vmatpush2.msra.mxu0 0.0
    %926 = vmatprep.subr.mxu0 0.0
    %927 = vmatpush2.msra.mxu0 0.0
    %928 = vmatprep.subr.mxu0 0.0
    %929 = vmatpush2.msra.mxu0 0.0
    %930 = vmatprep.subr.mxu0 0.0
    %931 = vmatpush2.msra.mxu0 0.0
    %932 = vmatprep.subr.mxu0 0.0
    %933 = vmatpush2.msra.mxu0 0.0
    %934 = vmatprep.subr.mxu0 0.0
    %935 = vmatpush2.msra.mxu0 0.0
    %936 = vmatprep.subr.mxu0 0.0
    %937 = vmatpush2.msra.mxu0 0.0
    %938 = vmatprep.subr.mxu0 0.0
    %939 = vmatpush2.msra.mxu0 0.0
    %940 = vmatprep.subr.mxu0 0.0
    %941 = vmatpush2.msra.mxu0 0.0
    %942 = vmatprep.subr.mxu0 0.0
    %943 = vmatpush2.msra.mxu0 0.0
    %944 = vmatprep.subr.mxu0 0.0
    %945 = vmatpush2.msra.mxu0 0.0
    %946 = vmatprep.subr.mxu0 0.0
    %947 = vmatpush2.msra.mxu0 0.0
    %948 = vmatprep.subr.mxu0 0.0
    %949 = vmatpush2.msra.mxu0 0.0
    %950 = vmatprep.subr.mxu0 0.0
    %951 = vmatpush2.msra.mxu0 0.0
    %952 = vmatprep.mubr.f32.mxu0 0.0
    %v953 = vand.u32 %v882, 4294901760
    %v954 = vsub.f32 %v882, %v953
    %v955 = vand.u32 %v954, 4294901760
    %v956 = vsub.f32 %v954, %v955
    %v957 = vand.u32 %v956, 4294901760
    %958 = vmatmul.mubr.f32.gmra.mxu0 %v957
    %v959 = vpop.f32.mrf.mxu0
    %v960 = vadd.f32 %v878, %v959
    %v961 = vpop.f32.mrf.mxu0
    %962 = vdwg.mxu0
    %963 = vmatprep.subr.mxu0 0.0
    %964 = vmatpush1.msra.mxu0 0.0
    %965 = vmatprep.subr.mxu0 0.0
    %966 = vmatpush1.msra.mxu0 0.0
    %967 = vmatprep.subr.mxu0 0.0
    %968 = vmatpush1.msra.mxu0 0.0
    %969 = vmatprep.subr.mxu0 0.0
    %970 = vmatpush1.msra.mxu0 0.0
    %971 = vmatprep.subr.mxu0 0.0
    %972 = vmatpush1.msra.mxu0 0.0
    %973 = vmatprep.subr.mxu0 0.0
    %974 = vmatpush1.msra.mxu0 0.0
    %975 = vmatprep.subr.mxu0 0.0
    %976 = vmatpush1.msra.mxu0 0.0
    %977 = vmatprep.subr.mxu0 0.0
    %978 = vmatpush1.msra.mxu0 0.0
    %979 = vmatprep.subr.mxu0 0.0
    %980 = vmatpush1.msra.mxu0 0.0
    %981 = vmatprep.subr.mxu0 0.0
    %982 = vmatpush1.msra.mxu0 0.0
    %983 = vmatprep.subr.mxu0 0.0
    %984 = vmatpush1.msra.mxu0 0.0
    %985 = vmatprep.subr.mxu0 0.0
    %986 = vmatpush1.msra.mxu0 0.0
    %987 = vmatprep.subr.mxu0 0.0
    %v988 = vand.u32 %v872, 4294901760
    %v989 = vsub.f32 %v872, %v988
    %v990 = vand.u32 %v989, 4294901760
    %v991 = vsub.f32 %v989, %v990
    %v992 = vand.u32 %v991, 4294901760
    %993 = vmatpush1.msra.mxu0 %v992
    %994 = vmatprep.subr.mxu0 0.0
    %v995 = vand.u32 %v871, 4294901760
    %v996 = vsub.f32 %v871, %v995
    %v997 = vand.u32 %v996, 4294901760
    %v998 = vsub.f32 %v996, %v997
    %v999 = vand.u32 %v998, 4294901760
    %1000 = vmatpush1.msra.mxu0 %v999
    %1001 = vmatprep.subr.mxu0 0.0
    %v1002 = vand.u32 %v870, 4294901760
    %v1003 = vsub.f32 %v870, %v1002
    %v1004 = vand.u32 %v1003, 4294901760
    %v1005 = vsub.f32 %v1003, %v1004
    %v1006 = vand.u32 %v1005, 4294901760
    %1007 = vmatpush1.msra.mxu0 %v1006
    %1008 = vmatprep.subr.mxu0 0.0
    %v1009 = vand.u32 %v869, 4294901760
    %v1010 = vsub.f32 %v869, %v1009
    %v1011 = vand.u32 %v1010, 4294901760
    %v1012 = vsub.f32 %v1010, %v1011
    %v1013 = vand.u32 %v1012, 4294901760
    %1014 = vmatpush1.msra.mxu0 %v1013
    %1015 = vmatprep.subr.mxu0 0.0
    %1016 = vmatpush2.msra.mxu0 0.0
    %1017 = vmatprep.subr.mxu0 0.0
    %1018 = vmatpush2.msra.mxu0 0.0
    %1019 = vmatprep.subr.mxu0 0.0
    %1020 = vmatpush2.msra.mxu0 0.0
    %1021 = vmatprep.subr.mxu0 0.0
    %1022 = vmatpush2.msra.mxu0 0.0
    %1023 = vmatprep.subr.mxu0 0.0
    %1024 = vmatpush2.msra.mxu0 0.0
    %1025 = vmatprep.subr.mxu0 0.0
    %1026 = vmatpush2.msra.mxu0 0.0
    %1027 = vmatprep.subr.mxu0 0.0
    %1028 = vmatpush2.msra.mxu0 0.0
    %1029 = vmatprep.subr.mxu0 0.0
    %1030 = vmatpush2.msra.mxu0 0.0
    %1031 = vmatprep.subr.mxu0 0.0
    %1032 = vmatpush2.msra.mxu0 0.0
    %1033 = vmatprep.subr.mxu0 0.0
    %1034 = vmatpush2.msra.mxu0 0.0
    %1035 = vmatprep.subr.mxu0 0.0
    %1036 = vmatpush2.msra.mxu0 0.0
    %1037 = vmatprep.subr.mxu0 0.0
    %1038 = vmatpush2.msra.mxu0 0.0
    %1039 = vmatprep.subr.mxu0 0.0
    %1040 = vmatpush2.msra.mxu0 0.0
    %1041 = vmatprep.subr.mxu0 0.0
    %1042 = vmatpush2.msra.mxu0 0.0
    %1043 = vmatprep.subr.mxu0 0.0
    %1044 = vmatpush2.msra.mxu0 0.0
    %1045 = vmatprep.subr.mxu0 0.0
    %1046 = vmatpush2.msra.mxu0 0.0
    %1047 = vmatprep.mubr.f32.mxu0 0.0
    %v1048 = vand.u32 %v882, 4294901760
    %1049 = vmatmul.mubr.f32.gmra.mxu0 %v1048
    %v1050 = vpop.f32.mrf.mxu0
    %v1051 = vadd.f32 %v960, %v1050
    %v1052 = vpop.f32.mrf.mxu0
    %1053 = vdwg.mxu0
    %1054 = vmatprep.subr.mxu0 0.0
    %1055 = vmatpush1.msra.mxu0 0.0
    %1056 = vmatprep.subr.mxu0 0.0
    %1057 = vmatpush1.msra.mxu0 0.0
    %1058 = vmatprep.subr.mxu0 0.0
    %1059 = vmatpush1.msra.mxu0 0.0
    %1060 = vmatprep.subr.mxu0 0.0
    %1061 = vmatpush1.msra.mxu0 0.0
    %1062 = vmatprep.subr.mxu0 0.0
    %1063 = vmatpush1.msra.mxu0 0.0
    %1064 = vmatprep.subr.mxu0 0.0
    %1065 = vmatpush1.msra.mxu0 0.0
    %1066 = vmatprep.subr.mxu0 0.0
    %1067 = vmatpush1.msra.mxu0 0.0
    %1068 = vmatprep.subr.mxu0 0.0
    %1069 = vmatpush1.msra.mxu0 0.0
    %1070 = vmatprep.subr.mxu0 0.0
    %1071 = vmatpush1.msra.mxu0 0.0
    %1072 = vmatprep.subr.mxu0 0.0
    %1073 = vmatpush1.msra.mxu0 0.0
    %1074 = vmatprep.subr.mxu0 0.0
    %1075 = vmatpush1.msra.mxu0 0.0
    %1076 = vmatprep.subr.mxu0 0.0
    %1077 = vmatpush1.msra.mxu0 0.0
    %1078 = vmatprep.subr.mxu0 0.0
    %v1079 = vand.u32 %v872, 4294901760
    %v1080 = vsub.f32 %v872, %v1079
    %1081 = vmatpush1.msra.mxu0 %v1080
    %1082 = vmatprep.subr.mxu0 0.0
    %v1083 = vand.u32 %v871, 4294901760
    %v1084 = vsub.f32 %v871, %v1083
    %1085 = vmatpush1.msra.mxu0 %v1084
    %1086 = vmatprep.subr.mxu0 0.0
    %v1087 = vand.u32 %v870, 4294901760
    %v1088 = vsub.f32 %v870, %v1087
    %1089 = vmatpush1.msra.mxu0 %v1088
    %1090 = vmatprep.subr.mxu0 0.0
    %v1091 = vand.u32 %v869, 4294901760
    %v1092 = vsub.f32 %v869, %v1091
    %1093 = vmatpush1.msra.mxu0 %v1092
    %1094 = vmatprep.subr.mxu0 0.0
    %1095 = vmatpush2.msra.mxu0 0.0
    %1096 = vmatprep.subr.mxu0 0.0
    %1097 = vmatpush2.msra.mxu0 0.0
    %1098 = vmatprep.subr.mxu0 0.0
    %1099 = vmatpush2.msra.mxu0 0.0
    %1100 = vmatprep.subr.mxu0 0.0
    %1101 = vmatpush2.msra.mxu0 0.0
    %1102 = vmatprep.subr.mxu0 0.0
    %1103 = vmatpush2.msra.mxu0 0.0
    %1104 = vmatprep.subr.mxu0 0.0
    %1105 = vmatpush2.msra.mxu0 0.0
    %1106 = vmatprep.subr.mxu0 0.0
    %1107 = vmatpush2.msra.mxu0 0.0
    %1108 = vmatprep.subr.mxu0 0.0
    %1109 = vmatpush2.msra.mxu0 0.0
    %1110 = vmatprep.subr.mxu0 0.0
    %1111 = vmatpush2.msra.mxu0 0.0
    %1112 = vmatprep.subr.mxu0 0.0
    %1113 = vmatpush2.msra.mxu0 0.0
    %1114 = vmatprep.subr.mxu0 0.0
    %1115 = vmatpush2.msra.mxu0 0.0
    %1116 = vmatprep.subr.mxu0 0.0
    %1117 = vmatpush2.msra.mxu0 0.0
    %1118 = vmatprep.subr.mxu0 0.0
    %1119 = vmatpush2.msra.mxu0 0.0
    %1120 = vmatprep.subr.mxu0 0.0
    %1121 = vmatpush2.msra.mxu0 0.0
    %1122 = vmatprep.subr.mxu0 0.0
    %1123 = vmatpush2.msra.mxu0 0.0
    %1124 = vmatprep.subr.mxu0 0.0
    %1125 = vmatpush2.msra.mxu0 0.0
    %1126 = vmatprep.mubr.f32.mxu0 0.0
    %v1127 = vand.u32 %v882, 4294901760
    %v1128 = vsub.f32 %v882, %v1127
    %1129 = vmatmul.mubr.f32.gmra.mxu0 %v1128
    %v1130 = vpop.f32.mrf.mxu0
    %v1131 = vadd.f32 %v1051, %v1130
    %v1132 = vpop.f32.mrf.mxu0
    %1133 = vdwg.mxu0
    %1134 = vmatprep.subr.mxu0 0.0
    %1135 = vmatpush1.msra.mxu0 0.0
    %1136 = vmatprep.subr.mxu0 0.0
    %1137 = vmatpush1.msra.mxu0 0.0
    %1138 = vmatprep.subr.mxu0 0.0
    %1139 = vmatpush1.msra.mxu0 0.0
    %1140 = vmatprep.subr.mxu0 0.0
    %1141 = vmatpush1.msra.mxu0 0.0
    %1142 = vmatprep.subr.mxu0 0.0
    %1143 = vmatpush1.msra.mxu0 0.0
    %1144 = vmatprep.subr.mxu0 0.0
    %1145 = vmatpush1.msra.mxu0 0.0
    %1146 = vmatprep.subr.mxu0 0.0
    %1147 = vmatpush1.msra.mxu0 0.0
    %1148 = vmatprep.subr.mxu0 0.0
    %1149 = vmatpush1.msra.mxu0 0.0
    %1150 = vmatprep.subr.mxu0 0.0
    %1151 = vmatpush1.msra.mxu0 0.0
    %1152 = vmatprep.subr.mxu0 0.0
    %1153 = vmatpush1.msra.mxu0 0.0
    %1154 = vmatprep.subr.mxu0 0.0
    %1155 = vmatpush1.msra.mxu0 0.0
    %1156 = vmatprep.subr.mxu0 0.0
    %1157 = vmatpush1.msra.mxu0 0.0
    %1158 = vmatprep.subr.mxu0 0.0
    %v1159 = vand.u32 %v872, 4294901760
    %1160 = vmatpush1.msra.mxu0 %v1159
    %1161 = vmatprep.subr.mxu0 0.0
    %v1162 = vand.u32 %v871, 4294901760
    %1163 = vmatpush1.msra.mxu0 %v1162
    %1164 = vmatprep.subr.mxu0 0.0
    %v1165 = vand.u32 %v870, 4294901760
    %1166 = vmatpush1.msra.mxu0 %v1165
    %1167 = vmatprep.subr.mxu0 0.0
    %v1168 = vand.u32 %v869, 4294901760
    %1169 = vmatpush1.msra.mxu0 %v1168
    %1170 = vmatprep.subr.mxu0 0.0
    %1171 = vmatpush2.msra.mxu0 0.0
    %1172 = vmatprep.subr.mxu0 0.0
    %1173 = vmatpush2.msra.mxu0 0.0
    %1174 = vmatprep.subr.mxu0 0.0
    %1175 = vmatpush2.msra.mxu0 0.0
    %1176 = vmatprep.subr.mxu0 0.0
    %1177 = vmatpush2.msra.mxu0 0.0
    %1178 = vmatprep.subr.mxu0 0.0
    %1179 = vmatpush2.msra.mxu0 0.0
    %1180 = vmatprep.subr.mxu0 0.0
    %1181 = vmatpush2.msra.mxu0 0.0
    %1182 = vmatprep.subr.mxu0 0.0
    %1183 = vmatpush2.msra.mxu0 0.0
    %1184 = vmatprep.subr.mxu0 0.0
    %1185 = vmatpush2.msra.mxu0 0.0
    %1186 = vmatprep.subr.mxu0 0.0
    %1187 = vmatpush2.msra.mxu0 0.0
    %1188 = vmatprep.subr.mxu0 0.0
    %1189 = vmatpush2.msra.mxu0 0.0
    %1190 = vmatprep.subr.mxu0 0.0
    %1191 = vmatpush2.msra.mxu0 0.0
    %1192 = vmatprep.subr.mxu0 0.0
    %1193 = vmatpush2.msra.mxu0 0.0
    %1194 = vmatprep.subr.mxu0 0.0
    %1195 = vmatpush2.msra.mxu0 0.0
    %1196 = vmatprep.subr.mxu0 0.0
    %1197 = vmatpush2.msra.mxu0 0.0
    %1198 = vmatprep.subr.mxu0 0.0
    %1199 = vmatpush2.msra.mxu0 0.0
    %1200 = vmatprep.subr.mxu0 0.0
    %1201 = vmatpush2.msra.mxu0 0.0
    %1202 = vmatprep.mubr.f32.mxu0 0.0
    %v1203 = vand.u32 %v882, 4294901760
    %v1204 = vsub.f32 %v882, %v1203
    %v1205 = vand.u32 %v1204, 4294901760
    %1206 = vmatmul.mubr.f32.gmra.mxu0 %v1205
    %v1207 = vpop.f32.mrf.mxu0
    %v1208 = vadd.f32 %v1131, %v1207
    %v1209 = vpop.f32.mrf.mxu0
    %1210 = vdwg.mxu0
    %1211 = vmatprep.subr.mxu0 0.0
    %1212 = vmatpush1.msra.mxu0 0.0
    %1213 = vmatprep.subr.mxu0 0.0
    %1214 = vmatpush1.msra.mxu0 0.0
    %1215 = vmatprep.subr.mxu0 0.0
    %1216 = vmatpush1.msra.mxu0 0.0
    %1217 = vmatprep.subr.mxu0 0.0
    %1218 = vmatpush1.msra.mxu0 0.0
    %1219 = vmatprep.subr.mxu0 0.0
    %1220 = vmatpush1.msra.mxu0 0.0
    %1221 = vmatprep.subr.mxu0 0.0
    %1222 = vmatpush1.msra.mxu0 0.0
    %1223 = vmatprep.subr.mxu0 0.0
    %1224 = vmatpush1.msra.mxu0 0.0
    %1225 = vmatprep.subr.mxu0 0.0
    %1226 = vmatpush1.msra.mxu0 0.0
    %1227 = vmatprep.subr.mxu0 0.0
    %1228 = vmatpush1.msra.mxu0 0.0
    %1229 = vmatprep.subr.mxu0 0.0
    %1230 = vmatpush1.msra.mxu0 0.0
    %1231 = vmatprep.subr.mxu0 0.0
    %1232 = vmatpush1.msra.mxu0 0.0
    %1233 = vmatprep.subr.mxu0 0.0
    %1234 = vmatpush1.msra.mxu0 0.0
    %1235 = vmatprep.subr.mxu0 0.0
    %v1236 = vand.u32 %v872, 4294901760
    %v1237 = vsub.f32 %v872, %v1236
    %v1238 = vand.u32 %v1237, 4294901760
    %1239 = vmatpush1.msra.mxu0 %v1238
    %1240 = vmatprep.subr.mxu0 0.0
    %v1241 = vand.u32 %v871, 4294901760
    %v1242 = vsub.f32 %v871, %v1241
    %v1243 = vand.u32 %v1242, 4294901760
    %1244 = vmatpush1.msra.mxu0 %v1243
    %1245 = vmatprep.subr.mxu0 0.0
    %v1246 = vand.u32 %v870, 4294901760
    %v1247 = vsub.f32 %v870, %v1246
    %v1248 = vand.u32 %v1247, 4294901760
    %1249 = vmatpush1.msra.mxu0 %v1248
    %1250 = vmatprep.subr.mxu0 0.0
    %v1251 = vand.u32 %v869, 4294901760
    %v1252 = vsub.f32 %v869, %v1251
    %v1253 = vand.u32 %v1252, 4294901760
    %1254 = vmatpush1.msra.mxu0 %v1253
    %1255 = vmatprep.subr.mxu0 0.0
    %1256 = vmatpush2.msra.mxu0 0.0
    %1257 = vmatprep.subr.mxu0 0.0
    %1258 = vmatpush2.msra.mxu0 0.0
    %1259 = vmatprep.subr.mxu0 0.0
    %1260 = vmatpush2.msra.mxu0 0.0
    %1261 = vmatprep.subr.mxu0 0.0
    %1262 = vmatpush2.msra.mxu0 0.0
    %1263 = vmatprep.subr.mxu0 0.0
    %1264 = vmatpush2.msra.mxu0 0.0
    %1265 = vmatprep.subr.mxu0 0.0
    %1266 = vmatpush2.msra.mxu0 0.0
    %1267 = vmatprep.subr.mxu0 0.0
    %1268 = vmatpush2.msra.mxu0 0.0
    %1269 = vmatprep.subr.mxu0 0.0
    %1270 = vmatpush2.msra.mxu0 0.0
    %1271 = vmatprep.subr.mxu0 0.0
    %1272 = vmatpush2.msra.mxu0 0.0
    %1273 = vmatprep.subr.mxu0 0.0
    %1274 = vmatpush2.msra.mxu0 0.0
    %1275 = vmatprep.subr.mxu0 0.0
    %1276 = vmatpush2.msra.mxu0 0.0
    %1277 = vmatprep.subr.mxu0 0.0
    %1278 = vmatpush2.msra.mxu0 0.0
    %1279 = vmatprep.subr.mxu0 0.0
    %1280 = vmatpush2.msra.mxu0 0.0
    %1281 = vmatprep.subr.mxu0 0.0
    %1282 = vmatpush2.msra.mxu0 0.0
    %1283 = vmatprep.subr.mxu0 0.0
    %1284 = vmatpush2.msra.mxu0 0.0
    %1285 = vmatprep.subr.mxu0 0.0
    %1286 = vmatpush2.msra.mxu0 0.0
    %1287 = vmatprep.mubr.f32.mxu0 0.0
    %v1288 = vand.u32 %v882, 4294901760
    %1289 = vmatmul.mubr.f32.gmra.mxu0 %v1288
    %v1290 = vpop.f32.mrf.mxu0
    %v1291 = vadd.f32 %v1208, %v1290
    %v1292 = vpop.f32.mrf.mxu0
    %1293 = vdwg.mxu0
    %1294 = vmatprep.subr.mxu0 0.0
    %1295 = vmatpush1.msra.mxu0 0.0
    %1296 = vmatprep.subr.mxu0 0.0
    %1297 = vmatpush1.msra.mxu0 0.0
    %1298 = vmatprep.subr.mxu0 0.0
    %1299 = vmatpush1.msra.mxu0 0.0
    %1300 = vmatprep.subr.mxu0 0.0
    %1301 = vmatpush1.msra.mxu0 0.0
    %1302 = vmatprep.subr.mxu0 0.0
    %1303 = vmatpush1.msra.mxu0 0.0
    %1304 = vmatprep.subr.mxu0 0.0
    %1305 = vmatpush1.msra.mxu0 0.0
    %1306 = vmatprep.subr.mxu0 0.0
    %1307 = vmatpush1.msra.mxu0 0.0
    %1308 = vmatprep.subr.mxu0 0.0
    %1309 = vmatpush1.msra.mxu0 0.0
    %1310 = vmatprep.subr.mxu0 0.0
    %1311 = vmatpush1.msra.mxu0 0.0
    %1312 = vmatprep.subr.mxu0 0.0
    %1313 = vmatpush1.msra.mxu0 0.0
    %1314 = vmatprep.subr.mxu0 0.0
    %1315 = vmatpush1.msra.mxu0 0.0
    %1316 = vmatprep.subr.mxu0 0.0
    %1317 = vmatpush1.msra.mxu0 0.0
    %1318 = vmatprep.subr.mxu0 0.0
    %v1319 = vand.u32 %v872, 4294901760
    %1320 = vmatpush1.msra.mxu0 %v1319
    %1321 = vmatprep.subr.mxu0 0.0
    %v1322 = vand.u32 %v871, 4294901760
    %1323 = vmatpush1.msra.mxu0 %v1322
    %1324 = vmatprep.subr.mxu0 0.0
    %v1325 = vand.u32 %v870, 4294901760
    %1326 = vmatpush1.msra.mxu0 %v1325
    %1327 = vmatprep.subr.mxu0 0.0
    %v1328 = vand.u32 %v869, 4294901760
    %1329 = vmatpush1.msra.mxu0 %v1328
    %1330 = vmatprep.subr.mxu0 0.0
    %1331 = vmatpush2.msra.mxu0 0.0
    %1332 = vmatprep.subr.mxu0 0.0
    %1333 = vmatpush2.msra.mxu0 0.0
    %1334 = vmatprep.subr.mxu0 0.0
    %1335 = vmatpush2.msra.mxu0 0.0
    %1336 = vmatprep.subr.mxu0 0.0
    %1337 = vmatpush2.msra.mxu0 0.0
    %1338 = vmatprep.subr.mxu0 0.0
    %1339 = vmatpush2.msra.mxu0 0.0
    %1340 = vmatprep.subr.mxu0 0.0
    %1341 = vmatpush2.msra.mxu0 0.0
    %1342 = vmatprep.subr.mxu0 0.0
    %1343 = vmatpush2.msra.mxu0 0.0
    %1344 = vmatprep.subr.mxu0 0.0
    %1345 = vmatpush2.msra.mxu0 0.0
    %1346 = vmatprep.subr.mxu0 0.0
    %1347 = vmatpush2.msra.mxu0 0.0
    %1348 = vmatprep.subr.mxu0 0.0
    %1349 = vmatpush2.msra.mxu0 0.0
    %1350 = vmatprep.subr.mxu0 0.0
    %1351 = vmatpush2.msra.mxu0 0.0
    %1352 = vmatprep.subr.mxu0 0.0
    %1353 = vmatpush2.msra.mxu0 0.0
    %1354 = vmatprep.subr.mxu0 0.0
    %1355 = vmatpush2.msra.mxu0 0.0
    %1356 = vmatprep.subr.mxu0 0.0
    %1357 = vmatpush2.msra.mxu0 0.0
    %1358 = vmatprep.subr.mxu0 0.0
    %1359 = vmatpush2.msra.mxu0 0.0
    %1360 = vmatprep.subr.mxu0 0.0
    %1361 = vmatpush2.msra.mxu0 0.0
    %1362 = vmatprep.mubr.f32.mxu0 0.0
    %v1363 = vand.u32 %v882, 4294901760
    %1364 = vmatmul.mubr.f32.gmra.mxu0 %v1363
    %v1365 = vpop.f32.mrf.mxu0
    %v1366 = vadd.f32 %v1291, %v1365
    %v1367 = vpop.f32.mrf.mxu0
    %1368 = vdwg.mxu0
    %s1369 = scalar_lea.vmem %s6, 32
    %v1370 = vld [vmem:[%s1369] sm:$0xff]
    %v1371 = vld [vmem:[%s1369 + $0x8] sm:$0xff]
    %v1372 = vld [vmem:[%s1369 + $0x10] sm:$0xff]
    %v1373 = vld [vmem:[%s1369 + $0x18] sm:$0xff]
    %s1374 = scalar_lea.vmem %s7, 1
    %v1375 = vld [vmem:[%s1374] sm:$0x1]
    %v1377 = vlaneseq
    %v1378 = vshrl.u32 %v1377, 7
    %v1379 = vsub.s32 0, %v1378
    %v1380 = vrot.slane %v1375, %v1379
    %1382 = vmatprep.subr.mxu0 0.0
    %1383 = vmatpush1.msra.mxu0 0.0
    %1384 = vmatprep.subr.mxu0 0.0
    %1385 = vmatpush1.msra.mxu0 0.0
    %1386 = vmatprep.subr.mxu0 0.0
    %1387 = vmatpush1.msra.mxu0 0.0
    %1388 = vmatprep.subr.mxu0 0.0
    %1389 = vmatpush1.msra.mxu0 0.0
    %1390 = vmatprep.subr.mxu0 0.0
    %1391 = vmatpush1.msra.mxu0 0.0
    %1392 = vmatprep.subr.mxu0 0.0
    %1393 = vmatpush1.msra.mxu0 0.0
    %1394 = vmatprep.subr.mxu0 0.0
    %1395 = vmatpush1.msra.mxu0 0.0
    %1396 = vmatprep.subr.mxu0 0.0
    %1397 = vmatpush1.msra.mxu0 0.0
    %1398 = vmatprep.subr.mxu0 0.0
    %1399 = vmatpush1.msra.mxu0 0.0
    %1400 = vmatprep.subr.mxu0 0.0
    %1401 = vmatpush1.msra.mxu0 0.0
    %1402 = vmatprep.subr.mxu0 0.0
    %1403 = vmatpush1.msra.mxu0 0.0
    %1404 = vmatprep.subr.mxu0 0.0
    %1405 = vmatpush1.msra.mxu0 0.0
    %1406 = vmatprep.subr.mxu0 0.0
    %v1407 = vand.u32 %v1373, 4294901760
    %1408 = vmatpush1.msra.mxu0 %v1407
    %1409 = vmatprep.subr.mxu0 0.0
    %v1410 = vand.u32 %v1372, 4294901760
    %1411 = vmatpush1.msra.mxu0 %v1410
    %1412 = vmatprep.subr.mxu0 0.0
    %v1413 = vand.u32 %v1371, 4294901760
    %1414 = vmatpush1.msra.mxu0 %v1413
    %1415 = vmatprep.subr.mxu0 0.0
    %v1416 = vand.u32 %v1370, 4294901760
    %1417 = vmatpush1.msra.mxu0 %v1416
    %1418 = vmatprep.subr.mxu0 0.0
    %1419 = vmatpush2.msra.mxu0 0.0
    %1420 = vmatprep.subr.mxu0 0.0
    %1421 = vmatpush2.msra.mxu0 0.0
    %1422 = vmatprep.subr.mxu0 0.0
    %1423 = vmatpush2.msra.mxu0 0.0
    %1424 = vmatprep.subr.mxu0 0.0
    %1425 = vmatpush2.msra.mxu0 0.0
    %1426 = vmatprep.subr.mxu0 0.0
    %1427 = vmatpush2.msra.mxu0 0.0
    %1428 = vmatprep.subr.mxu0 0.0
    %1429 = vmatpush2.msra.mxu0 0.0
    %1430 = vmatprep.subr.mxu0 0.0
    %1431 = vmatpush2.msra.mxu0 0.0
    %1432 = vmatprep.subr.mxu0 0.0
    %1433 = vmatpush2.msra.mxu0 0.0
    %1434 = vmatprep.subr.mxu0 0.0
    %1435 = vmatpush2.msra.mxu0 0.0
    %1436 = vmatprep.subr.mxu0 0.0
    %1437 = vmatpush2.msra.mxu0 0.0
    %1438 = vmatprep.subr.mxu0 0.0
    %1439 = vmatpush2.msra.mxu0 0.0
    %1440 = vmatprep.subr.mxu0 0.0
    %1441 = vmatpush2.msra.mxu0 0.0
    %1442 = vmatprep.subr.mxu0 0.0
    %1443 = vmatpush2.msra.mxu0 0.0
    %1444 = vmatprep.subr.mxu0 0.0
    %1445 = vmatpush2.msra.mxu0 0.0
    %1446 = vmatprep.subr.mxu0 0.0
    %1447 = vmatpush2.msra.mxu0 0.0
    %1448 = vmatprep.subr.mxu0 0.0
    %1449 = vmatpush2.msra.mxu0 0.0
    %1450 = vmatprep.mubr.f32.mxu0 0.0
    %v1451 = vand.u32 %v882, 4294901760
    %v1452 = vsub.f32 %v882, %v1451
    %v1453 = vand.u32 %v1452, 4294901760
    %v1454 = vsub.f32 %v1452, %v1453
    %v1455 = vand.u32 %v1454, 4294901760
    %1456 = vmatmul.mubr.f32.gmra.mxu0 %v1455
    %v1457 = vpop.f32.mrf.mxu0
    %v1458 = vadd.f32 %v1380, %v1457
    %v1459 = vpop.f32.mrf.mxu0
    %1460 = vdwg.mxu0
    %1461 = vmatprep.subr.mxu0 0.0
    %1462 = vmatpush1.msra.mxu0 0.0
    %1463 = vmatprep.subr.mxu0 0.0
    %1464 = vmatpush1.msra.mxu0 0.0
    %1465 = vmatprep.subr.mxu0 0.0
    %1466 = vmatpush1.msra.mxu0 0.0
    %1467 = vmatprep.subr.mxu0 0.0
    %1468 = vmatpush1.msra.mxu0 0.0
    %1469 = vmatprep.subr.mxu0 0.0
    %1470 = vmatpush1.msra.mxu0 0.0
    %1471 = vmatprep.subr.mxu0 0.0
    %1472 = vmatpush1.msra.mxu0 0.0
    %1473 = vmatprep.subr.mxu0 0.0
    %1474 = vmatpush1.msra.mxu0 0.0
    %1475 = vmatprep.subr.mxu0 0.0
    %1476 = vmatpush1.msra.mxu0 0.0
    %1477 = vmatprep.subr.mxu0 0.0
    %1478 = vmatpush1.msra.mxu0 0.0
    %1479 = vmatprep.subr.mxu0 0.0
    %1480 = vmatpush1.msra.mxu0 0.0
    %1481 = vmatprep.subr.mxu0 0.0
    %1482 = vmatpush1.msra.mxu0 0.0
    %1483 = vmatprep.subr.mxu0 0.0
    %1484 = vmatpush1.msra.mxu0 0.0
    %1485 = vmatprep.subr.mxu0 0.0
    %v1486 = vand.u32 %v1373, 4294901760
    %v1487 = vsub.f32 %v1373, %v1486
    %v1488 = vand.u32 %v1487, 4294901760
    %v1489 = vsub.f32 %v1487, %v1488
    %v1490 = vand.u32 %v1489, 4294901760
    %1491 = vmatpush1.msra.mxu0 %v1490
    %1492 = vmatprep.subr.mxu0 0.0
    %v1493 = vand.u32 %v1372, 4294901760
    %v1494 = vsub.f32 %v1372, %v1493
    %v1495 = vand.u32 %v1494, 4294901760
    %v1496 = vsub.f32 %v1494, %v1495
    %v1497 = vand.u32 %v1496, 4294901760
    %1498 = vmatpush1.msra.mxu0 %v1497
    %1499 = vmatprep.subr.mxu0 0.0
    %v1500 = vand.u32 %v1371, 4294901760
    %v1501 = vsub.f32 %v1371, %v1500
    %v1502 = vand.u32 %v1501, 4294901760
    %v1503 = vsub.f32 %v1501, %v1502
    %v1504 = vand.u32 %v1503, 4294901760
    %1505 = vmatpush1.msra.mxu0 %v1504
    %1506 = vmatprep.subr.mxu0 0.0
    %v1507 = vand.u32 %v1370, 4294901760
    %v1508 = vsub.f32 %v1370, %v1507
    %v1509 = vand.u32 %v1508, 4294901760
    %v1510 = vsub.f32 %v1508, %v1509
    %v1511 = vand.u32 %v1510, 4294901760
    %1512 = vmatpush1.msra.mxu0 %v1511
    %1513 = vmatprep.subr.mxu0 0.0
    %1514 = vmatpush2.msra.mxu0 0.0
    %1515 = vmatprep.subr.mxu0 0.0
    %1516 = vmatpush2.msra.mxu0 0.0
    %1517 = vmatprep.subr.mxu0 0.0
    %1518 = vmatpush2.msra.mxu0 0.0
    %1519 = vmatprep.subr.mxu0 0.0
    %1520 = vmatpush2.msra.mxu0 0.0
    %1521 = vmatprep.subr.mxu0 0.0
    %1522 = vmatpush2.msra.mxu0 0.0
    %1523 = vmatprep.subr.mxu0 0.0
    %1524 = vmatpush2.msra.mxu0 0.0
    %1525 = vmatprep.subr.mxu0 0.0
    %1526 = vmatpush2.msra.mxu0 0.0
    %1527 = vmatprep.subr.mxu0 0.0
    %1528 = vmatpush2.msra.mxu0 0.0
    %1529 = vmatprep.subr.mxu0 0.0
    %1530 = vmatpush2.msra.mxu0 0.0
    %1531 = vmatprep.subr.mxu0 0.0
    %1532 = vmatpush2.msra.mxu0 0.0
    %1533 = vmatprep.subr.mxu0 0.0
    %1534 = vmatpush2.msra.mxu0 0.0
    %1535 = vmatprep.subr.mxu0 0.0
    %1536 = vmatpush2.msra.mxu0 0.0
    %1537 = vmatprep.subr.mxu0 0.0
    %1538 = vmatpush2.msra.mxu0 0.0
    %1539 = vmatprep.subr.mxu0 0.0
    %1540 = vmatpush2.msra.mxu0 0.0
    %1541 = vmatprep.subr.mxu0 0.0
    %1542 = vmatpush2.msra.mxu0 0.0
    %1543 = vmatprep.subr.mxu0 0.0
    %1544 = vmatpush2.msra.mxu0 0.0
    %1545 = vmatprep.mubr.f32.mxu0 0.0
    %v1546 = vand.u32 %v882, 4294901760
    %1547 = vmatmul.mubr.f32.gmra.mxu0 %v1546
    %v1548 = vpop.f32.mrf.mxu0
    %v1549 = vadd.f32 %v1458, %v1548
    %v1550 = vpop.f32.mrf.mxu0
    %1551 = vdwg.mxu0
    %1552 = vmatprep.subr.mxu0 0.0
    %1553 = vmatpush1.msra.mxu0 0.0
    %1554 = vmatprep.subr.mxu0 0.0
    %1555 = vmatpush1.msra.mxu0 0.0
    %1556 = vmatprep.subr.mxu0 0.0
    %1557 = vmatpush1.msra.mxu0 0.0
    %1558 = vmatprep.subr.mxu0 0.0
    %1559 = vmatpush1.msra.mxu0 0.0
    %1560 = vmatprep.subr.mxu0 0.0
    %1561 = vmatpush1.msra.mxu0 0.0
    %1562 = vmatprep.subr.mxu0 0.0
    %1563 = vmatpush1.msra.mxu0 0.0
    %1564 = vmatprep.subr.mxu0 0.0
    %1565 = vmatpush1.msra.mxu0 0.0
    %1566 = vmatprep.subr.mxu0 0.0
    %1567 = vmatpush1.msra.mxu0 0.0
    %1568 = vmatprep.subr.mxu0 0.0
    %1569 = vmatpush1.msra.mxu0 0.0
    %1570 = vmatprep.subr.mxu0 0.0
    %1571 = vmatpush1.msra.mxu0 0.0
    %1572 = vmatprep.subr.mxu0 0.0
    %1573 = vmatpush1.msra.mxu0 0.0
    %1574 = vmatprep.subr.mxu0 0.0
    %1575 = vmatpush1.msra.mxu0 0.0
    %1576 = vmatprep.subr.mxu0 0.0
    %v1577 = vand.u32 %v1373, 4294901760
    %v1578 = vsub.f32 %v1373, %v1577
    %1579 = vmatpush1.msra.mxu0 %v1578
    %1580 = vmatprep.subr.mxu0 0.0
    %v1581 = vand.u32 %v1372, 4294901760
    %v1582 = vsub.f32 %v1372, %v1581
    %1583 = vmatpush1.msra.mxu0 %v1582
    %1584 = vmatprep.subr.mxu0 0.0
    %v1585 = vand.u32 %v1371, 4294901760
    %v1586 = vsub.f32 %v1371, %v1585
    %1587 = vmatpush1.msra.mxu0 %v1586
    %1588 = vmatprep.subr.mxu0 0.0
    %v1589 = vand.u32 %v1370, 4294901760
    %v1590 = vsub.f32 %v1370, %v1589
    %1591 = vmatpush1.msra.mxu0 %v1590
    %1592 = vmatprep.subr.mxu0 0.0
    %1593 = vmatpush2.msra.mxu0 0.0
    %1594 = vmatprep.subr.mxu0 0.0
    %1595 = vmatpush2.msra.mxu0 0.0
    %1596 = vmatprep.subr.mxu0 0.0
    %1597 = vmatpush2.msra.mxu0 0.0
    %1598 = vmatprep.subr.mxu0 0.0
    %1599 = vmatpush2.msra.mxu0 0.0
    %1600 = vmatprep.subr.mxu0 0.0
    %1601 = vmatpush2.msra.mxu0 0.0
    %1602 = vmatprep.subr.mxu0 0.0
    %1603 = vmatpush2.msra.mxu0 0.0
    %1604 = vmatprep.subr.mxu0 0.0
    %1605 = vmatpush2.msra.mxu0 0.0
    %1606 = vmatprep.subr.mxu0 0.0
    %1607 = vmatpush2.msra.mxu0 0.0
    %1608 = vmatprep.subr.mxu0 0.0
    %1609 = vmatpush2.msra.mxu0 0.0
    %1610 = vmatprep.subr.mxu0 0.0
    %1611 = vmatpush2.msra.mxu0 0.0
    %1612 = vmatprep.subr.mxu0 0.0
    %1613 = vmatpush2.msra.mxu0 0.0
    %1614 = vmatprep.subr.mxu0 0.0
    %1615 = vmatpush2.msra.mxu0 0.0
    %1616 = vmatprep.subr.mxu0 0.0
    %1617 = vmatpush2.msra.mxu0 0.0
    %1618 = vmatprep.subr.mxu0 0.0
    %1619 = vmatpush2.msra.mxu0 0.0
    %1620 = vmatprep.subr.mxu0 0.0
    %1621 = vmatpush2.msra.mxu0 0.0
    %1622 = vmatprep.subr.mxu0 0.0
    %1623 = vmatpush2.msra.mxu0 0.0
    %1624 = vmatprep.mubr.f32.mxu0 0.0
    %v1625 = vand.u32 %v882, 4294901760
    %v1626 = vsub.f32 %v882, %v1625
    %1627 = vmatmul.mubr.f32.gmra.mxu0 %v1626
    %v1628 = vpop.f32.mrf.mxu0
    %v1629 = vadd.f32 %v1549, %v1628
    %v1630 = vpop.f32.mrf.mxu0
    %1631 = vdwg.mxu0
    %1632 = vmatprep.subr.mxu0 0.0
    %1633 = vmatpush1.msra.mxu0 0.0
    %1634 = vmatprep.subr.mxu0 0.0
    %1635 = vmatpush1.msra.mxu0 0.0
    %1636 = vmatprep.subr.mxu0 0.0
    %1637 = vmatpush1.msra.mxu0 0.0
    %1638 = vmatprep.subr.mxu0 0.0
    %1639 = vmatpush1.msra.mxu0 0.0
    %1640 = vmatprep.subr.mxu0 0.0
    %1641 = vmatpush1.msra.mxu0 0.0
    %1642 = vmatprep.subr.mxu0 0.0
    %1643 = vmatpush1.msra.mxu0 0.0
    %1644 = vmatprep.subr.mxu0 0.0
    %1645 = vmatpush1.msra.mxu0 0.0
    %1646 = vmatprep.subr.mxu0 0.0
    %1647 = vmatpush1.msra.mxu0 0.0
    %1648 = vmatprep.subr.mxu0 0.0
    %1649 = vmatpush1.msra.mxu0 0.0
    %1650 = vmatprep.subr.mxu0 0.0
    %1651 = vmatpush1.msra.mxu0 0.0
    %1652 = vmatprep.subr.mxu0 0.0
    %1653 = vmatpush1.msra.mxu0 0.0
    %1654 = vmatprep.subr.mxu0 0.0
    %1655 = vmatpush1.msra.mxu0 0.0
    %1656 = vmatprep.subr.mxu0 0.0
    %v1657 = vand.u32 %v1373, 4294901760
    %1658 = vmatpush1.msra.mxu0 %v1657
    %1659 = vmatprep.subr.mxu0 0.0
    %v1660 = vand.u32 %v1372, 4294901760
    %1661 = vmatpush1.msra.mxu0 %v1660
    %1662 = vmatprep.subr.mxu0 0.0
    %v1663 = vand.u32 %v1371, 4294901760
    %1664 = vmatpush1.msra.mxu0 %v1663
    %1665 = vmatprep.subr.mxu0 0.0
    %v1666 = vand.u32 %v1370, 4294901760
    %1667 = vmatpush1.msra.mxu0 %v1666
    %1668 = vmatprep.subr.mxu0 0.0
    %1669 = vmatpush2.msra.mxu0 0.0
    %1670 = vmatprep.subr.mxu0 0.0
    %1671 = vmatpush2.msra.mxu0 0.0
    %1672 = vmatprep.subr.mxu0 0.0
    %1673 = vmatpush2.msra.mxu0 0.0
    %1674 = vmatprep.subr.mxu0 0.0
    %1675 = vmatpush2.msra.mxu0 0.0
    %1676 = vmatprep.subr.mxu0 0.0
    %1677 = vmatpush2.msra.mxu0 0.0
    %1678 = vmatprep.subr.mxu0 0.0
    %1679 = vmatpush2.msra.mxu0 0.0
    %1680 = vmatprep.subr.mxu0 0.0
    %1681 = vmatpush2.msra.mxu0 0.0
    %1682 = vmatprep.subr.mxu0 0.0
    %1683 = vmatpush2.msra.mxu0 0.0
    %1684 = vmatprep.subr.mxu0 0.0
    %1685 = vmatpush2.msra.mxu0 0.0
    %1686 = vmatprep.subr.mxu0 0.0
    %1687 = vmatpush2.msra.mxu0 0.0
    %1688 = vmatprep.subr.mxu0 0.0
    %1689 = vmatpush2.msra.mxu0 0.0
    %1690 = vmatprep.subr.mxu0 0.0
    %1691 = vmatpush2.msra.mxu0 0.0
    %1692 = vmatprep.subr.mxu0 0.0
    %1693 = vmatpush2.msra.mxu0 0.0
    %1694 = vmatprep.subr.mxu0 0.0
    %1695 = vmatpush2.msra.mxu0 0.0
    %1696 = vmatprep.subr.mxu0 0.0
    %1697 = vmatpush2.msra.mxu0 0.0
    %1698 = vmatprep.subr.mxu0 0.0
    %1699 = vmatpush2.msra.mxu0 0.0
    %1700 = vmatprep.mubr.f32.mxu0 0.0
    %v1701 = vand.u32 %v882, 4294901760
    %v1702 = vsub.f32 %v882, %v1701
    %v1703 = vand.u32 %v1702, 4294901760
    %1704 = vmatmul.mubr.f32.gmra.mxu0 %v1703
    %v1705 = vpop.f32.mrf.mxu0
    %v1706 = vadd.f32 %v1629, %v1705
    %v1707 = vpop.f32.mrf.mxu0
    %1708 = vdwg.mxu0
    %1709 = vmatprep.subr.mxu0 0.0
    %1710 = vmatpush1.msra.mxu0 0.0
    %1711 = vmatprep.subr.mxu0 0.0
    %1712 = vmatpush1.msra.mxu0 0.0
    %1713 = vmatprep.subr.mxu0 0.0
    %1714 = vmatpush1.msra.mxu0 0.0
    %1715 = vmatprep.subr.mxu0 0.0
    %1716 = vmatpush1.msra.mxu0 0.0
    %1717 = vmatprep.subr.mxu0 0.0
    %1718 = vmatpush1.msra.mxu0 0.0
    %1719 = vmatprep.subr.mxu0 0.0
    %1720 = vmatpush1.msra.mxu0 0.0
    %1721 = vmatprep.subr.mxu0 0.0
    %1722 = vmatpush1.msra.mxu0 0.0
    %1723 = vmatprep.subr.mxu0 0.0
    %1724 = vmatpush1.msra.mxu0 0.0
    %1725 = vmatprep.subr.mxu0 0.0
    %1726 = vmatpush1.msra.mxu0 0.0
    %1727 = vmatprep.subr.mxu0 0.0
    %1728 = vmatpush1.msra.mxu0 0.0
    %1729 = vmatprep.subr.mxu0 0.0
    %1730 = vmatpush1.msra.mxu0 0.0
    %1731 = vmatprep.subr.mxu0 0.0
    %1732 = vmatpush1.msra.mxu0 0.0
    %1733 = vmatprep.subr.mxu0 0.0
    %v1734 = vand.u32 %v1373, 4294901760
    %v1735 = vsub.f32 %v1373, %v1734
    %v1736 = vand.u32 %v1735, 4294901760
    %1737 = vmatpush1.msra.mxu0 %v1736
    %1738 = vmatprep.subr.mxu0 0.0
    %v1739 = vand.u32 %v1372, 4294901760
    %v1740 = vsub.f32 %v1372, %v1739
    %v1741 = vand.u32 %v1740, 4294901760
    %1742 = vmatpush1.msra.mxu0 %v1741
    %1743 = vmatprep.subr.mxu0 0.0
    %v1744 = vand.u32 %v1371, 4294901760
    %v1745 = vsub.f32 %v1371, %v1744
    %v1746 = vand.u32 %v1745, 4294901760
    %1747 = vmatpush1.msra.mxu0 %v1746
    %1748 = vmatprep.subr.mxu0 0.0
    %v1749 = vand.u32 %v1370, 4294901760
    %v1750 = vsub.f32 %v1370, %v1749
    %v1751 = vand.u32 %v1750, 4294901760
    %1752 = vmatpush1.msra.mxu0 %v1751
    %1753 = vmatprep.subr.mxu0 0.0
    %1754 = vmatpush2.msra.mxu0 0.0
    %1755 = vmatprep.subr.mxu0 0.0
    %1756 = vmatpush2.msra.mxu0 0.0
    %1757 = vmatprep.subr.mxu0 0.0
    %1758 = vmatpush2.msra.mxu0 0.0
    %1759 = vmatprep.subr.mxu0 0.0
    %1760 = vmatpush2.msra.mxu0 0.0
    %1761 = vmatprep.subr.mxu0 0.0
    %1762 = vmatpush2.msra.mxu0 0.0
    %1763 = vmatprep.subr.mxu0 0.0
    %1764 = vmatpush2.msra.mxu0 0.0
    %1765 = vmatprep.subr.mxu0 0.0
    %1766 = vmatpush2.msra.mxu0 0.0
    %1767 = vmatprep.subr.mxu0 0.0
    %1768 = vmatpush2.msra.mxu0 0.0
    %1769 = vmatprep.subr.mxu0 0.0
    %1770 = vmatpush2.msra.mxu0 0.0
    %1771 = vmatprep.subr.mxu0 0.0
    %1772 = vmatpush2.msra.mxu0 0.0
    %1773 = vmatprep.subr.mxu0 0.0
    %1774 = vmatpush2.msra.mxu0 0.0
    %1775 = vmatprep.subr.mxu0 0.0
    %1776 = vmatpush2.msra.mxu0 0.0
    %1777 = vmatprep.subr.mxu0 0.0
    %1778 = vmatpush2.msra.mxu0 0.0
    %1779 = vmatprep.subr.mxu0 0.0
    %1780 = vmatpush2.msra.mxu0 0.0
    %1781 = vmatprep.subr.mxu0 0.0
    %1782 = vmatpush2.msra.mxu0 0.0
    %1783 = vmatprep.subr.mxu0 0.0
    %1784 = vmatpush2.msra.mxu0 0.0
    %1785 = vmatprep.mubr.f32.mxu0 0.0
    %v1786 = vand.u32 %v882, 4294901760
    %1787 = vmatmul.mubr.f32.gmra.mxu0 %v1786
    %v1788 = vpop.f32.mrf.mxu0
    %v1789 = vadd.f32 %v1706, %v1788
    %v1790 = vpop.f32.mrf.mxu0
    %1791 = vdwg.mxu0
    %1792 = vmatprep.subr.mxu0 0.0
    %1793 = vmatpush1.msra.mxu0 0.0
    %1794 = vmatprep.subr.mxu0 0.0
    %1795 = vmatpush1.msra.mxu0 0.0
    %1796 = vmatprep.subr.mxu0 0.0
    %1797 = vmatpush1.msra.mxu0 0.0
    %1798 = vmatprep.subr.mxu0 0.0
    %1799 = vmatpush1.msra.mxu0 0.0
    %1800 = vmatprep.subr.mxu0 0.0
    %1801 = vmatpush1.msra.mxu0 0.0
    %1802 = vmatprep.subr.mxu0 0.0
    %1803 = vmatpush1.msra.mxu0 0.0
    %1804 = vmatprep.subr.mxu0 0.0
    %1805 = vmatpush1.msra.mxu0 0.0
    %1806 = vmatprep.subr.mxu0 0.0
    %1807 = vmatpush1.msra.mxu0 0.0
    %1808 = vmatprep.subr.mxu0 0.0
    %1809 = vmatpush1.msra.mxu0 0.0
    %1810 = vmatprep.subr.mxu0 0.0
    %1811 = vmatpush1.msra.mxu0 0.0
    %1812 = vmatprep.subr.mxu0 0.0
    %1813 = vmatpush1.msra.mxu0 0.0
    %1814 = vmatprep.subr.mxu0 0.0
    %1815 = vmatpush1.msra.mxu0 0.0
    %1816 = vmatprep.subr.mxu0 0.0
    %v1817 = vand.u32 %v1373, 4294901760
    %1818 = vmatpush1.msra.mxu0 %v1817
    %1819 = vmatprep.subr.mxu0 0.0
    %v1820 = vand.u32 %v1372, 4294901760
    %1821 = vmatpush1.msra.mxu0 %v1820
    %1822 = vmatprep.subr.mxu0 0.0
    %v1823 = vand.u32 %v1371, 4294901760
    %1824 = vmatpush1.msra.mxu0 %v1823
    %1825 = vmatprep.subr.mxu0 0.0
    %v1826 = vand.u32 %v1370, 4294901760
    %1827 = vmatpush1.msra.mxu0 %v1826
    %1828 = vmatprep.subr.mxu0 0.0
    %1829 = vmatpush2.msra.mxu0 0.0
    %1830 = vmatprep.subr.mxu0 0.0
    %1831 = vmatpush2.msra.mxu0 0.0
    %1832 = vmatprep.subr.mxu0 0.0
    %1833 = vmatpush2.msra.mxu0 0.0
    %1834 = vmatprep.subr.mxu0 0.0
    %1835 = vmatpush2.msra.mxu0 0.0
    %1836 = vmatprep.subr.mxu0 0.0
    %1837 = vmatpush2.msra.mxu0 0.0
    %1838 = vmatprep.subr.mxu0 0.0
    %1839 = vmatpush2.msra.mxu0 0.0
    %1840 = vmatprep.subr.mxu0 0.0
    %1841 = vmatpush2.msra.mxu0 0.0
    %1842 = vmatprep.subr.mxu0 0.0
    %1843 = vmatpush2.msra.mxu0 0.0
    %1844 = vmatprep.subr.mxu0 0.0
    %1845 = vmatpush2.msra.mxu0 0.0
    %1846 = vmatprep.subr.mxu0 0.0
    %1847 = vmatpush2.msra.mxu0 0.0
    %1848 = vmatprep.subr.mxu0 0.0
    %1849 = vmatpush2.msra.mxu0 0.0
    %1850 = vmatprep.subr.mxu0 0.0
    %1851 = vmatpush2.msra.mxu0 0.0
    %1852 = vmatprep.subr.mxu0 0.0
    %1853 = vmatpush2.msra.mxu0 0.0
    %1854 = vmatprep.subr.mxu0 0.0
    %1855 = vmatpush2.msra.mxu0 0.0
    %1856 = vmatprep.subr.mxu0 0.0
    %1857 = vmatpush2.msra.mxu0 0.0
    %1858 = vmatprep.subr.mxu0 0.0
    %1859 = vmatpush2.msra.mxu0 0.0
    %1860 = vmatprep.mubr.f32.mxu0 0.0
    %v1861 = vand.u32 %v882, 4294901760
    %1862 = vmatmul.mubr.f32.gmra.mxu0 %v1861
    %v1863 = vpop.f32.mrf.mxu0
    %v1864 = vadd.f32 %v1789, %v1863
    %v1865 = vpop.f32.mrf.mxu0
    %1866 = vdwg.mxu0
    %v1867 = vsub.f32 %v1366, %v1864
    %v1868 = vsub.f32 0.0, %v1867
    %v1869 = vmul.f32 %v1868, 1.442695
    %v1870 = vpow.pop %v1869
    %v1871 = vadd.f32 %v1870, 1.0
    %v1872 = vrcp.pop %v1871
    %v1873 = vmul.f32 1.0, %v1872
    %v1874 = vsub.f32 1.0, %v1873
    %v1875 = vlaneseq
    %v1876 = vshrl.u32 %v1875, 7
    %v1877 = vsub.s32 0, %v1876
    %v1878 = vrot.slane %v1873, %v1877
    %1880 = vbcast.lane.b32.xlu0 %v1878, 256
    %v1881 = vpop.permute.xlu0 %1880
    %s1883 = sor.u32 256, 8
    %1884 = vbcast.lane.b32.xlu0 %v1878, %s1883
    %v1885 = vpop.permute.xlu0 %1884
    %v1886 = vlaneseq
    %v1887 = vshrl.u32 %v1886, 7
    %v1888 = vsub.s32 1, %v1887
    %v1889 = vrot.slane %v1873, %v1888
    %1891 = vbcast.lane.b32.xlu0 %v1889, 256
    %v1892 = vpop.permute.xlu0 %1891
    %s1894 = sor.u32 256, 8
    %1895 = vbcast.lane.b32.xlu0 %v1889, %s1894
    %v1896 = vpop.permute.xlu0 %1895
    %v1897 = vmul.f32 %v58, %v1881
    %v1898 = vmul.f32 %v59, %v1881
    %v1899 = vmul.f32 %v60, %v1881
    %v1900 = vmul.f32 %v61, %v1881
    %v1901 = vmul.f32 %v62, %v1881
    %v1902 = vmul.f32 %v63, %v1881
    %v1903 = vmul.f32 %v64, %v1881
    %v1904 = vmul.f32 %v65, %v1881
    %v1905 = vmul.f32 %v66, %v1881
    %v1906 = vmul.f32 %v67, %v1881
    %v1907 = vmul.f32 %v68, %v1881
    %v1908 = vmul.f32 %v69, %v1881
    %v1909 = vmul.f32 %v70, %v1881
    %v1910 = vmul.f32 %v71, %v1881
    %v1911 = vmul.f32 %v72, %v1881
    %v1912 = vmul.f32 %v73, %v1881
    %v1913 = vmul.f32 %v74, %v1885
    %v1914 = vmul.f32 %v75, %v1885
    %v1915 = vmul.f32 %v76, %v1885
    %v1916 = vmul.f32 %v77, %v1885
    %v1917 = vmul.f32 %v78, %v1885
    %v1918 = vmul.f32 %v79, %v1885
    %v1919 = vmul.f32 %v80, %v1885
    %v1920 = vmul.f32 %v81, %v1885
    %v1921 = vmul.f32 %v82, %v1885
    %v1922 = vmul.f32 %v83, %v1885
    %v1923 = vmul.f32 %v84, %v1885
    %v1924 = vmul.f32 %v85, %v1885
    %v1925 = vmul.f32 %v86, %v1885
    %v1926 = vmul.f32 %v87, %v1885
    %v1927 = vmul.f32 %v88, %v1885
    %v1928 = vmul.f32 %v89, %v1885
    %v1929 = vmul.f32 %v90, %v1892
    %v1930 = vmul.f32 %v91, %v1892
    %v1931 = vmul.f32 %v92, %v1892
    %v1932 = vmul.f32 %v93, %v1892
    %v1933 = vmul.f32 %v94, %v1892
    %v1934 = vmul.f32 %v95, %v1892
    %v1935 = vmul.f32 %v96, %v1892
    %v1936 = vmul.f32 %v97, %v1892
    %v1937 = vmul.f32 %v98, %v1892
    %v1938 = vmul.f32 %v99, %v1892
    %v1939 = vmul.f32 %v100, %v1892
    %v1940 = vmul.f32 %v101, %v1892
    %v1941 = vmul.f32 %v102, %v1892
    %v1942 = vmul.f32 %v103, %v1892
    %v1943 = vmul.f32 %v104, %v1892
    %v1944 = vmul.f32 %v105, %v1892
    %v1945 = vmul.f32 %v106, %v1896
    %v1946 = vmul.f32 %v107, %v1896
    %v1947 = vmul.f32 %v108, %v1896
    %v1948 = vmul.f32 %v109, %v1896
    %v1949 = vmul.f32 %v110, %v1896
    %v1950 = vmul.f32 %v111, %v1896
    %v1951 = vmul.f32 %v112, %v1896
    %v1952 = vmul.f32 %v113, %v1896
    %v1953 = vmul.f32 %v114, %v1896
    %v1954 = vmul.f32 %v115, %v1896
    %v1955 = vmul.f32 %v116, %v1896
    %v1956 = vmul.f32 %v117, %v1896
    %v1957 = vmul.f32 %v118, %v1896
    %v1958 = vmul.f32 %v119, %v1896
    %v1959 = vmul.f32 %v120, %v1896
    %v1960 = vmul.f32 %v121, %v1896
    %1961 = vst [vmem:[#allocation7] sm:$0xff] %v1897
    %1962 = vst [vmem:[#allocation7 + $0x8] sm:$0xff] %v1898
    %1963 = vst [vmem:[#allocation7 + $0x10] sm:$0xff] %v1899
    %1964 = vst [vmem:[#allocation7 + $0x18] sm:$0xff] %v1900
    %1965 = vst [vmem:[#allocation7 + $0x20] sm:$0xff] %v1901
    %1966 = vst [vmem:[#allocation7 + $0x28] sm:$0xff] %v1902
    %1967 = vst [vmem:[#allocation7 + $0x30] sm:$0xff] %v1903
    %1968 = vst [vmem:[#allocation7 + $0x38] sm:$0xff] %v1904
    %1969 = vst [vmem:[#allocation7 + $0x40] sm:$0xff] %v1905
    %1970 = vst [vmem:[#allocation7 + $0x48] sm:$0xff] %v1906
    %1971 = vst [vmem:[#allocation7 + $0x50] sm:$0xff] %v1907
    %1972 = vst [vmem:[#allocation7 + $0x58] sm:$0xff] %v1908
    %1973 = vst [vmem:[#allocation7 + $0x60] sm:$0xff] %v1909
    %1974 = vst [vmem:[#allocation7 + $0x68] sm:$0xff] %v1910
    %1975 = vst [vmem:[#allocation7 + $0x70] sm:$0xff] %v1911
    %1976 = vst [vmem:[#allocation7 + $0x78] sm:$0xff] %v1912
    %1977 = vst [vmem:[#allocation7 + $0x80] sm:$0xff] %v1913
    %1978 = vst [vmem:[#allocation7 + $0x88] sm:$0xff] %v1914
    %1979 = vst [vmem:[#allocation7 + $0x90] sm:$0xff] %v1915
    %1980 = vst [vmem:[#allocation7 + $0x98] sm:$0xff] %v1916
    %1981 = vst [vmem:[#allocation7 + $0xa0] sm:$0xff] %v1917
    %1982 = vst [vmem:[#allocation7 + $0xa8] sm:$0xff] %v1918
    %1983 = vst [vmem:[#allocation7 + $0xb0] sm:$0xff] %v1919
    %1984 = vst [vmem:[#allocation7 + $0xb8] sm:$0xff] %v1920
    %1985 = vst [vmem:[#allocation7 + $0xc0] sm:$0xff] %v1921
    %1986 = vst [vmem:[#allocation7 + $0xc8] sm:$0xff] %v1922
    %1987 = vst [vmem:[#allocation7 + $0xd0] sm:$0xff] %v1923
    %1988 = vst [vmem:[#allocation7 + $0xd8] sm:$0xff] %v1924
    %1989 = vst [vmem:[#allocation7 + $0xe0] sm:$0xff] %v1925
    %1990 = vst [vmem:[#allocation7 + $0xe8] sm:$0xff] %v1926
    %1991 = vst [vmem:[#allocation7 + $0xf0] sm:$0xff] %v1927
    %1992 = vst [vmem:[#allocation7 + $0xf8] sm:$0xff] %v1928
    %1993 = vst [vmem:[#allocation7 + $0x200] sm:$0xff] %v1929
    %1994 = vst [vmem:[#allocation7 + $0x208] sm:$0xff] %v1930
    %1995 = vst [vmem:[#allocation7 + $0x210] sm:$0xff] %v1931
    %1996 = vst [vmem:[#allocation7 + $0x218] sm:$0xff] %v1932
    %1997 = vst [vmem:[#allocation7 + $0x220] sm:$0xff] %v1933
    %1998 = vst [vmem:[#allocation7 + $0x228] sm:$0xff] %v1934
    %1999 = vst [vmem:[#allocation7 + $0x230] sm:$0xff] %v1935
    %2000 = vst [vmem:[#allocation7 + $0x238] sm:$0xff] %v1936
    %2001 = vst [vmem:[#allocation7 + $0x240] sm:$0xff] %v1937
    %2002 = vst [vmem:[#allocation7 + $0x248] sm:$0xff] %v1938
    %2003 = vst [vmem:[#allocation7 + $0x250] sm:$0xff] %v1939
    %2004 = vst [vmem:[#allocation7 + $0x258] sm:$0xff] %v1940
    %2005 = vst [vmem:[#allocation7 + $0x260] sm:$0xff] %v1941
    %2006 = vst [vmem:[#allocation7 + $0x268] sm:$0xff] %v1942
    %2007 = vst [vmem:[#allocation7 + $0x270] sm:$0xff] %v1943
    %2008 = vst [vmem:[#allocation7 + $0x278] sm:$0xff] %v1944
    %2009 = vst [vmem:[#allocation7 + $0x280] sm:$0xff] %v1945
    %2010 = vst [vmem:[#allocation7 + $0x288] sm:$0xff] %v1946
    %2011 = vst [vmem:[#allocation7 + $0x290] sm:$0xff] %v1947
    %2012 = vst [vmem:[#allocation7 + $0x298] sm:$0xff] %v1948
    %2013 = vst [vmem:[#allocation7 + $0x2a0] sm:$0xff] %v1949
    %2014 = vst [vmem:[#allocation7 + $0x2a8] sm:$0xff] %v1950
    %2015 = vst [vmem:[#allocation7 + $0x2b0] sm:$0xff] %v1951
    %2016 = vst [vmem:[#allocation7 + $0x2b8] sm:$0xff] %v1952
    %2017 = vst [vmem:[#allocation7 + $0x2c0] sm:$0xff] %v1953
    %2018 = vst [vmem:[#allocation7 + $0x2c8] sm:$0xff] %v1954
    %2019 = vst [vmem:[#allocation7 + $0x2d0] sm:$0xff] %v1955
    %2020 = vst [vmem:[#allocation7 + $0x2d8] sm:$0xff] %v1956
    %2021 = vst [vmem:[#allocation7 + $0x2e0] sm:$0xff] %v1957
    %2022 = vst [vmem:[#allocation7 + $0x2e8] sm:$0xff] %v1958
    %2023 = vst [vmem:[#allocation7 + $0x2f0] sm:$0xff] %v1959
    %2024 = vst [vmem:[#allocation7 + $0x2f8] sm:$0xff] %v1960
    %v2025 = vld [vmem:[#allocation5] sm:$0xff]
    %v2026 = vld [vmem:[#allocation5 + $0x8] sm:$0xff]
    %v2027 = vld [vmem:[#allocation5 + $0x10] sm:$0xff]
    %v2028 = vld [vmem:[#allocation5 + $0x18] sm:$0xff]
    %v2029 = vld [vmem:[#allocation5 + $0x20] sm:$0xff]
    %v2030 = vld [vmem:[#allocation5 + $0x28] sm:$0xff]
    %v2031 = vld [vmem:[#allocation5 + $0x30] sm:$0xff]
    %v2032 = vld [vmem:[#allocation5 + $0x38] sm:$0xff]
    %v2033 = vld [vmem:[#allocation5 + $0x40] sm:$0xff]
    %v2034 = vld [vmem:[#allocation5 + $0x48] sm:$0xff]
    %v2035 = vld [vmem:[#allocation5 + $0x50] sm:$0xff]
    %v2036 = vld [vmem:[#allocation5 + $0x58] sm:$0xff]
    %v2037 = vld [vmem:[#allocation5 + $0x60] sm:$0xff]
    %v2038 = vld [vmem:[#allocation5 + $0x68] sm:$0xff]
    %v2039 = vld [vmem:[#allocation5 + $0x70] sm:$0xff]
    %v2040 = vld [vmem:[#allocation5 + $0x78] sm:$0xff]
    %v2041 = vld [vmem:[#allocation5 + $0x80] sm:$0xff]
    %v2042 = vld [vmem:[#allocation5 + $0x88] sm:$0xff]
    %v2043 = vld [vmem:[#allocation5 + $0x90] sm:$0xff]
    %v2044 = vld [vmem:[#allocation5 + $0x98] sm:$0xff]
    %v2045 = vld [vmem:[#allocation5 + $0xa0] sm:$0xff]
    %v2046 = vld [vmem:[#allocation5 + $0xa8] sm:$0xff]
    %v2047 = vld [vmem:[#allocation5 + $0xb0] sm:$0xff]
    %v2048 = vld [vmem:[#allocation5 + $0xb8] sm:$0xff]
    %v2049 = vld [vmem:[#allocation5 + $0xc0] sm:$0xff]
    %v2050 = vld [vmem:[#allocation5 + $0xc8] sm:$0xff]
    %v2051 = vld [vmem:[#allocation5 + $0xd0] sm:$0xff]
    %v2052 = vld [vmem:[#allocation5 + $0xd8] sm:$0xff]
    %v2053 = vld [vmem:[#allocation5 + $0xe0] sm:$0xff]
    %v2054 = vld [vmem:[#allocation5 + $0xe8] sm:$0xff]
    %v2055 = vld [vmem:[#allocation5 + $0xf0] sm:$0xff]
    %v2056 = vld [vmem:[#allocation5 + $0xf8] sm:$0xff]
    %v2057 = vld [vmem:[#allocation5 + $0x100] sm:$0xff]
    %v2058 = vld [vmem:[#allocation5 + $0x108] sm:$0xff]
    %v2059 = vld [vmem:[#allocation5 + $0x110] sm:$0xff]
    %v2060 = vld [vmem:[#allocation5 + $0x118] sm:$0xff]
    %v2061 = vld [vmem:[#allocation5 + $0x120] sm:$0xff]
    %v2062 = vld [vmem:[#allocation5 + $0x128] sm:$0xff]
    %v2063 = vld [vmem:[#allocation5 + $0x130] sm:$0xff]
    %v2064 = vld [vmem:[#allocation5 + $0x138] sm:$0xff]
    %v2065 = vld [vmem:[#allocation5 + $0x140] sm:$0xff]
    %v2066 = vld [vmem:[#allocation5 + $0x148] sm:$0xff]
    %v2067 = vld [vmem:[#allocation5 + $0x150] sm:$0xff]
    %v2068 = vld [vmem:[#allocation5 + $0x158] sm:$0xff]
    %v2069 = vld [vmem:[#allocation5 + $0x160] sm:$0xff]
    %v2070 = vld [vmem:[#allocation5 + $0x168] sm:$0xff]
    %v2071 = vld [vmem:[#allocation5 + $0x170] sm:$0xff]
    %v2072 = vld [vmem:[#allocation5 + $0x178] sm:$0xff]
    %v2073 = vld [vmem:[#allocation5 + $0x180] sm:$0xff]
    %v2074 = vld [vmem:[#allocation5 + $0x188] sm:$0xff]
    %v2075 = vld [vmem:[#allocation5 + $0x190] sm:$0xff]
    %v2076 = vld [vmem:[#allocation5 + $0x198] sm:$0xff]
    %v2077 = vld [vmem:[#allocation5 + $0x1a0] sm:$0xff]
    %v2078 = vld [vmem:[#allocation5 + $0x1a8] sm:$0xff]
    %v2079 = vld [vmem:[#allocation5 + $0x1b0] sm:$0xff]
    %v2080 = vld [vmem:[#allocation5 + $0x1b8] sm:$0xff]
    %v2081 = vld [vmem:[#allocation5 + $0x1c0] sm:$0xff]
    %v2082 = vld [vmem:[#allocation5 + $0x1c8] sm:$0xff]
    %v2083 = vld [vmem:[#allocation5 + $0x1d0] sm:$0xff]
    %v2084 = vld [vmem:[#allocation5 + $0x1d8] sm:$0xff]
    %v2085 = vld [vmem:[#allocation5 + $0x1e0] sm:$0xff]
    %v2086 = vld [vmem:[#allocation5 + $0x1e8] sm:$0xff]
    %v2087 = vld [vmem:[#allocation5 + $0x1f0] sm:$0xff]
    %v2088 = vld [vmem:[#allocation5 + $0x1f8] sm:$0xff]
    %v2089 = vlaneseq
    %v2090 = vshrl.u32 %v2089, 7
    %v2091 = vsub.s32 0, %v2090
    %v2092 = vrot.slane %v1874, %v2091
    %2094 = vbcast.lane.b32.xlu0 %v2092, 256
    %v2095 = vpop.permute.xlu0 %2094
    %s2097 = sor.u32 256, 8
    %2098 = vbcast.lane.b32.xlu0 %v2092, %s2097
    %v2099 = vpop.permute.xlu0 %2098
    %v2100 = vlaneseq
    %v2101 = vshrl.u32 %v2100, 7
    %v2102 = vsub.s32 1, %v2101
    %v2103 = vrot.slane %v1874, %v2102
    %2105 = vbcast.lane.b32.xlu0 %v2103, 256
    %v2106 = vpop.permute.xlu0 %2105
    %s2108 = sor.u32 256, 8
    %2109 = vbcast.lane.b32.xlu0 %v2103, %s2108
    %v2110 = vpop.permute.xlu0 %2109
    %v2111 = vmul.f32 %v2025, %v2095
    %v2112 = vmul.f32 %v2026, %v2095
    %v2113 = vmul.f32 %v2027, %v2095
    %v2114 = vmul.f32 %v2028, %v2095
    %v2115 = vmul.f32 %v2029, %v2095
    %v2116 = vmul.f32 %v2030, %v2095
    %v2117 = vmul.f32 %v2031, %v2095
    %v2118 = vmul.f32 %v2032, %v2095
    %v2119 = vmul.f32 %v2033, %v2095
    %v2120 = vmul.f32 %v2034, %v2095
    %v2121 = vmul.f32 %v2035, %v2095
    %v2122 = vmul.f32 %v2036, %v2095
    %v2123 = vmul.f32 %v2037, %v2095
    %v2124 = vmul.f32 %v2038, %v2095
    %v2125 = vmul.f32 %v2039, %v2095
    %v2126 = vmul.f32 %v2040, %v2095
    %v2127 = vmul.f32 %v2041, %v2099
    %v2128 = vmul.f32 %v2042, %v2099
    %v2129 = vmul.f32 %v2043, %v2099
    %v2130 = vmul.f32 %v2044, %v2099
    %v2131 = vmul.f32 %v2045, %v2099
    %v2132 = vmul.f32 %v2046, %v2099
    %v2133 = vmul.f32 %v2047, %v2099
    %v2134 = vmul.f32 %v2048, %v2099
    %v2135 = vmul.f32 %v2049, %v2099
    %v2136 = vmul.f32 %v2050, %v2099
    %v2137 = vmul.f32 %v2051, %v2099
    %v2138 = vmul.f32 %v2052, %v2099
    %v2139 = vmul.f32 %v2053, %v2099
    %v2140 = vmul.f32 %v2054, %v2099
    %v2141 = vmul.f32 %v2055, %v2099
    %v2142 = vmul.f32 %v2056, %v2099
    %v2143 = vmul.f32 %v2057, %v2106
    %v2144 = vmul.f32 %v2058, %v2106
    %v2145 = vmul.f32 %v2059, %v2106
    %v2146 = vmul.f32 %v2060, %v2106
    %v2147 = vmul.f32 %v2061, %v2106
    %v2148 = vmul.f32 %v2062, %v2106
    %v2149 = vmul.f32 %v2063, %v2106
    %v2150 = vmul.f32 %v2064, %v2106
    %v2151 = vmul.f32 %v2065, %v2106
    %v2152 = vmul.f32 %v2066, %v2106
    %v2153 = vmul.f32 %v2067, %v2106
    %v2154 = vmul.f32 %v2068, %v2106
    %v2155 = vmul.f32 %v2069, %v2106
    %v2156 = vmul.f32 %v2070, %v2106
    %v2157 = vmul.f32 %v2071, %v2106
    %v2158 = vmul.f32 %v2072, %v2106
    %v2159 = vmul.f32 %v2073, %v2110
    %v2160 = vmul.f32 %v2074, %v2110
    %v2161 = vmul.f32 %v2075, %v2110
    %v2162 = vmul.f32 %v2076, %v2110
    %v2163 = vmul.f32 %v2077, %v2110
    %v2164 = vmul.f32 %v2078, %v2110
    %v2165 = vmul.f32 %v2079, %v2110
    %v2166 = vmul.f32 %v2080, %v2110
    %v2167 = vmul.f32 %v2081, %v2110
    %v2168 = vmul.f32 %v2082, %v2110
    %v2169 = vmul.f32 %v2083, %v2110
    %v2170 = vmul.f32 %v2084, %v2110
    %v2171 = vmul.f32 %v2085, %v2110
    %v2172 = vmul.f32 %v2086, %v2110
    %v2173 = vmul.f32 %v2087, %v2110
    %v2174 = vmul.f32 %v2088, %v2110
    %s2175 = scalar_lea.vmem [#allocation7], 256
    %2176 = vst [vmem:[%s2175] sm:$0xff] %v2111
    %2177 = vst [vmem:[%s2175 + $0x8] sm:$0xff] %v2112
    %2178 = vst [vmem:[%s2175 + $0x10] sm:$0xff] %v2113
    %2179 = vst [vmem:[%s2175 + $0x18] sm:$0xff] %v2114
    %2180 = vst [vmem:[%s2175 + $0x20] sm:$0xff] %v2115
    %2181 = vst [vmem:[%s2175 + $0x28] sm:$0xff] %v2116
    %2182 = vst [vmem:[%s2175 + $0x30] sm:$0xff] %v2117
    %2183 = vst [vmem:[%s2175 + $0x38] sm:$0xff] %v2118
    %2184 = vst [vmem:[%s2175 + $0x40] sm:$0xff] %v2119
    %2185 = vst [vmem:[%s2175 + $0x48] sm:$0xff] %v2120
    %2186 = vst [vmem:[%s2175 + $0x50] sm:$0xff] %v2121
    %2187 = vst [vmem:[%s2175 + $0x58] sm:$0xff] %v2122
    %2188 = vst [vmem:[%s2175 + $0x60] sm:$0xff] %v2123
    %2189 = vst [vmem:[%s2175 + $0x68] sm:$0xff] %v2124
    %2190 = vst [vmem:[%s2175 + $0x70] sm:$0xff] %v2125
    %2191 = vst [vmem:[%s2175 + $0x78] sm:$0xff] %v2126
    %2192 = vst [vmem:[%s2175 + $0x80] sm:$0xff] %v2127
    %2193 = vst [vmem:[%s2175 + $0x88] sm:$0xff] %v2128
    %2194 = vst [vmem:[%s2175 + $0x90] sm:$0xff] %v2129
    %2195 = vst [vmem:[%s2175 + $0x98] sm:$0xff] %v2130
    %2196 = vst [vmem:[%s2175 + $0xa0] sm:$0xff] %v2131
    %2197 = vst [vmem:[%s2175 + $0xa8] sm:$0xff] %v2132
    %2198 = vst [vmem:[%s2175 + $0xb0] sm:$0xff] %v2133
    %2199 = vst [vmem:[%s2175 + $0xb8] sm:$0xff] %v2134
    %2200 = vst [vmem:[%s2175 + $0xc0] sm:$0xff] %v2135
    %2201 = vst [vmem:[%s2175 + $0xc8] sm:$0xff] %v2136
    %2202 = vst [vmem:[%s2175 + $0xd0] sm:$0xff] %v2137
    %2203 = vst [vmem:[%s2175 + $0xd8] sm:$0xff] %v2138
    %2204 = vst [vmem:[%s2175 + $0xe0] sm:$0xff] %v2139
    %2205 = vst [vmem:[%s2175 + $0xe8] sm:$0xff] %v2140
    %2206 = vst [vmem:[%s2175 + $0xf0] sm:$0xff] %v2141
    %2207 = vst [vmem:[%s2175 + $0xf8] sm:$0xff] %v2142
    %2208 = vst [vmem:[%s2175 + $0x200] sm:$0xff] %v2143
    %2209 = vst [vmem:[%s2175 + $0x208] sm:$0xff] %v2144
    %2210 = vst [vmem:[%s2175 + $0x210] sm:$0xff] %v2145
    %2211 = vst [vmem:[%s2175 + $0x218] sm:$0xff] %v2146
    %2212 = vst [vmem:[%s2175 + $0x220] sm:$0xff] %v2147
    %2213 = vst [vmem:[%s2175 + $0x228] sm:$0xff] %v2148
    %2214 = vst [vmem:[%s2175 + $0x230] sm:$0xff] %v2149
    %2215 = vst [vmem:[%s2175 + $0x238] sm:$0xff] %v2150
    %2216 = vst [vmem:[%s2175 + $0x240] sm:$0xff] %v2151
    %2217 = vst [vmem:[%s2175 + $0x248] sm:$0xff] %v2152
    %2218 = vst [vmem:[%s2175 + $0x250] sm:$0xff] %v2153
    %2219 = vst [vmem:[%s2175 + $0x258] sm:$0xff] %v2154
    %2220 = vst [vmem:[%s2175 + $0x260] sm:$0xff] %v2155
    %2221 = vst [vmem:[%s2175 + $0x268] sm:$0xff] %v2156
    %2222 = vst [vmem:[%s2175 + $0x270] sm:$0xff] %v2157
    %2223 = vst [vmem:[%s2175 + $0x278] sm:$0xff] %v2158
    %2224 = vst [vmem:[%s2175 + $0x280] sm:$0xff] %v2159
    %2225 = vst [vmem:[%s2175 + $0x288] sm:$0xff] %v2160
    %2226 = vst [vmem:[%s2175 + $0x290] sm:$0xff] %v2161
    %2227 = vst [vmem:[%s2175 + $0x298] sm:$0xff] %v2162
    %2228 = vst [vmem:[%s2175 + $0x2a0] sm:$0xff] %v2163
    %2229 = vst [vmem:[%s2175 + $0x2a8] sm:$0xff] %v2164
    %2230 = vst [vmem:[%s2175 + $0x2b0] sm:$0xff] %v2165
    %2231 = vst [vmem:[%s2175 + $0x2b8] sm:$0xff] %v2166
    %2232 = vst [vmem:[%s2175 + $0x2c0] sm:$0xff] %v2167
    %2233 = vst [vmem:[%s2175 + $0x2c8] sm:$0xff] %v2168
    %2234 = vst [vmem:[%s2175 + $0x2d0] sm:$0xff] %v2169
    %2235 = vst [vmem:[%s2175 + $0x2d8] sm:$0xff] %v2170
    %2236 = vst [vmem:[%s2175 + $0x2e0] sm:$0xff] %v2171
    %2237 = vst [vmem:[%s2175 + $0x2e8] sm:$0xff] %v2172
    %2238 = vst [vmem:[%s2175 + $0x2f0] sm:$0xff] %v2173
    %2239 = vst [vmem:[%s2175 + $0x2f8] sm:$0xff] %v2174
    // Predicated region
    $region42: #{tpu_custom_call.1} parent=1 // pred_check
      _
    $region43: #{tpu_custom_call.1} parent=1 // pred_check_branch
      %2241 = sbr.rel (0) target = $region45
    $region44: #{tpu_custom_call.1} parent=1 // pred_region
      %s2243 = ssub.s32 16384, 16384
      %2244 = vsyncadd [#allocation4], %s2243
      %s2245 = sshll.u32 [#allocation7], 4
      %s2246 = int_to_ptr.vmem [resolvable:$true] %s2245
      %2251 = dma.vmem_to_hbm [thread:$0]  %s2246, 16384, %s8, [#allocation4], 2048, 2048, 128
    $region45: #{tpu_custom_call.1} parent=1 // pred_fallthru
      _
    // Predicated region
    $region46: #{tpu_custom_call.1} parent=1 // pred_check
      _
    $region47: #{tpu_custom_call.1} parent=1 // pred_check_branch
      %2253 = sbr.rel (0) target = $region49
    $region48: #{tpu_custom_call.1} parent=1 // pred_region
      %2254 = dma.done [#allocation4], 16384
    $region49: #{tpu_custom_call.1} parent=1 // pred_fallthru
      _
    %2255 = vsyncpa [#allocation3], 1
    %2256 = vsyncpa [#allocation6], 1
    %2257 = vsyncpa [#allocation4], 1

</llo_original>
